<compile_context>
chip_gen: v5e
topology: v5e:2x2
jax: 0.10.0
libtpu: 0.0.40
codegen_flags: <defaults>
</compile_context>

<pallas_src>
import math

import numpy as np
import jax
import jax.numpy as jnp
from jax import lax
from jax.experimental import pallas as pl
from jax.experimental.pallas import tpu as pltpu

NEG_SLOPE = 0.01  # nn.LeakyReLU() default


def _round_up(a, m):
    return -(-a // m) * m


# ----------------------------------------------------------------------------
# Architecture construction (mirrors NoInterNet_compress.__init__ exactly)
# ----------------------------------------------------------------------------
def build_layer_dims(input_size, n_in, output_size=None, n_out=None, n_min=8):
    """Returns a list of (in_features, out_features) per nn.Linear."""
    output_size = input_size if output_size is None else output_size
    dims = [(input_size, n_in)]  # first Linear
    n_check = n_in
    n_out = n_in if n_out is None else n_out
    while n_check > n_min:
        n_out_hid = int(n_check / 2)
        dims.append((n_check, n_out_hid))
        n_check = n_out_hid
    while n_check < n_out:
        n_out_hid = n_check * 2
        dims.append((n_check, n_out_hid))
        n_check = n_out_hid
    dims.append((n_check, output_size))  # final Linear (no activation after)
    return dims


def init_params(dims, key):
    """PyTorch-layout params: W (out,in), b (out,), uniform(-1/sqrt(in), 1/sqrt(in))."""
    params = []
    for (fan_in, fan_out) in dims:
        key, kw, kb = jax.random.split(key, 3)
        bound = 1.0 / math.sqrt(fan_in)
        w = jax.random.uniform(kw, (fan_out, fan_in), jnp.float32, -bound, bound)
        b = jax.random.uniform(kb, (fan_out,), jnp.float32, -bound, bound)
        params.append((w, b))
    return params


def pack_params(params):
    """Pack per-layer (W(out,in), b(out,)) into zero-padded (L,F,F)/(L,F,1) stacks.

    Zero padding keeps padded feature rows of the activation exactly zero
    through every layer (0-weight rows -> 0 + 0 bias -> LeakyReLU(0) = 0).
    """
    L = len(params)
    F = max(max(w.shape) for w, _ in params)
    F = max(_round_up(F, 8), 8)
    w_stack = np.zeros((L, F, F), np.float32)
    b_stack = np.zeros((L, F, 1), np.float32)
    for l, (w, b) in enumerate(params):
        o, i = w.shape
        w_stack[l, :o, :i] = np.asarray(w)
        b_stack[l, :o, 0] = np.asarray(b)
    return jnp.asarray(w_stack), jnp.asarray(b_stack)


# ----------------------------------------------------------------------------
# Kernel: full MLP on one (TILE_BATCH, F) input slab -> (out_features, TILE_BATCH)
# ----------------------------------------------------------------------------
def make_mlp_kernel(n_layers, out_features):
    def kernel(x_ref, w_ref, b_ref, o_ref):
        # x_ref: (TB, F) natural row-major layout (no wrapper transpose).
        # Layer 0 contracts the feature axes of W (F,F) and x (TB,F), so the
        # result is already batch-on-lanes (F, TB); Mosaic does the relayout
        # on the XLU inside the pipeline.
        h = lax.dot_general(
            w_ref[0], x_ref[...],
            dimension_numbers=(((1,), (1,)), ((), ())),
            preferred_element_type=jnp.float32) + b_ref[0]
        h = jnp.maximum(h, NEG_SLOPE * h)

        # Hidden layers on the zero-padded (F, TB) slab.
        # NOTE: static unroll is fine for small L/F; switch to lax.fori_loop with
        # w_ref[pl.ds(l, 1)] indexing if this net is ever made much deeper/wider.
        for l in range(1, n_layers - 1):
            h = jnp.dot(w_ref[l], h, preferred_element_type=jnp.float32) + b_ref[l]
            h = jnp.maximum(h, NEG_SLOPE * h)

        # Final layer: no activation; keep only the true output rows.
        y = jnp.dot(w_ref[n_layers - 1], h,
                    preferred_element_type=jnp.float32) + b_ref[n_layers - 1]
        o_ref[...] = y[:out_features, :].astype(o_ref.dtype)

    return kernel


def no_internet_compress_forward(x, params, *, tile_batch=4096):
    """Forward pass of NoInterNet_compress. x: (batch, input_size) float32."""
    n_layers = len(params)
    in_features = params[0][0].shape[1]
    out_features = params[-1][0].shape[0]
    batch = x.shape[0]

    w_stack, b_stack = pack_params(params)
    L, F, _ = w_stack.shape

    # ---- Tile selection ------------------------------------------------------
    # 1) Pad batch only to the 128-lane grain (not up to the tile).
    bp = _round_up(max(batch, 1), 128)
    u = bp // 128
    # 2) Pick the largest 128-multiple tile that divides bp exactly and stays
    #    under the tile cap -> zero per-tile padding waste, large lane-dense tiles.
    cap = max(1, tile_batch // 128)
    d = max(dd for dd in range(1, u + 1) if u % dd == 0 and dd <= cap)
    # 3) v7x megacore: if everything fits in one block and it can be split on a
    #    128-lane boundary, split it so both TensorCores get a block.
    if u // d == 1 and d % 2 == 0:
        d //= 2
    tb = d * 128
    grid = (bp // tb,)

    # ---- Input padding (batch -> bp, features -> F, zeros) -------------------
    if batch == bp and in_features == F:
        x_in = x
    else:
        x_in = jnp.zeros((bp, F), x.dtype).at[:batch, :in_features].set(x)

    out_t = pl.pallas_call(
        make_mlp_kernel(n_layers, out_features),
        out_shape=jax.ShapeDtypeStruct((out_features, bp), x.dtype),
        grid=grid,
        in_specs=[
            # x in natural (TB, F) layout; F equals the full array dim.
            pl.BlockSpec((tb, F), lambda i: (i, 0)),
            # Constant index_map -> param stacks DMA'd once, VMEM-resident.
            pl.BlockSpec((L, F, F), lambda i: (0, 0, 0)),
            pl.BlockSpec((L, F, 1), lambda i: (0, 0, 0)),
        ],
        # Lane-dense output (batch on the lane axis) -> unmasked vector stores.
        out_specs=pl.BlockSpec((out_features, tb), lambda i: (0, i)),
        compiler_params=pltpu.CompilerParams(
            dimension_semantics=("parallel",),  # shard batch across TCs on v7x
        ),
    )(x_in, w_stack, b_stack)

    # Tiny (out_features x batch) transpose back to (batch, out_features).
    return out_t.T[:batch]


# ----------------------------------------------------------------------------
# Reference (pure JAX) for sanity check
# ----------------------------------------------------------------------------
def reference_forward(x, params):
    h = x.astype(jnp.float32)
    for i, (w, b) in enumerate(params):
        h = h @ w.T + b
        if i < len(params) - 1:
            h = jnp.where(h > 0, h, NEG_SLOPE * h)
    return h.astype(x.dtype)


if __name__ == "__main__":
    # Architecture: 16->32 ->16 ->8 ->16 ->32 ->16, LeakyReLU between all but last.
    input_size = 16
    n_in = 32

    dims = build_layer_dims(input_size, n_in)
    key = jax.random.PRNGKey(0)
    params = init_params(dims, key)

    # Case 1: batch=640 -> bp=640, tb=640, grid=1 (no padding waste).
    key, kx = jax.random.split(key)
    x1 = jax.random.normal(kx, (640, input_size), dtype=jnp.float32)
    out1 = jax.block_until_ready(no_internet_compress_forward(x1, params))
    ref1 = reference_forward(x1, params)
    assert out1.shape == (640, input_size), out1.shape
    assert jnp.allclose(out1, ref1, atol=1e-5, rtol=1e-5), "mismatch vs reference (case 1)"

    # Case 2: batch=200 -> bp=256, tb=128, grid=2 (exercises batch padding + multi-step grid).
    key, kx = jax.random.split(key)
    x2 = jax.random.normal(kx, (200, input_size), dtype=jnp.float32)
    out2 = jax.block_until_ready(no_internet_compress_forward(x2, params))
    ref2 = reference_forward(x2, params)
    assert out2.shape == (200, input_size), out2.shape
    assert jnp.allclose(out2, ref2, atol=1e-5, rtol=1e-5), "mismatch vs reference (case 2)"

    print("KERNEL_OK")
</pallas_src>

<mosaic_0001>
module attributes {stable_mosaic.version = 11 : i64} {
  func.func @kernel(%arg0: i32, %arg1: memref<640x32xf32, #tpu.memory_space<vmem>>, %arg2: memref<6x32x32xf32, #tpu.memory_space<vmem>>, %arg3: memref<6x32x1xf32, #tpu.memory_space<vmem>>, %arg4: memref<16x640xf32, #tpu.memory_space<vmem>>) attributes {dimension_semantics = [#tpu.dimension_semantics<parallel>], iteration_bounds = array<i64: 1>, scalar_prefetch = 0 : i64, scratch_operands = 0 : i64, tpu.core_type = #tpu.core_type<tc>, window_params = [{transform_indices = @transform_0, window_bounds = array<i64: 640, 32>}, {pipeline_mode = #tpu.pipeline_mode<synchronous>, transform_indices = @transform_1, window_bounds = array<i64: 6, 32, 32>}, {pipeline_mode = #tpu.pipeline_mode<synchronous>, transform_indices = @transform_2, window_bounds = array<i64: 6, 32, 1>}, {transform_indices = @transform_3, window_bounds = array<i64: 16, 640>}]} {
    %c0 = arith.constant 0 : index
    %c0_0 = arith.constant 0 : index
    %c0_1 = arith.constant 0 : index
    %0 = vector.load %arg2[%c0, %c0_0, %c0_1] : memref<6x32x32xf32, #tpu.memory_space<vmem>>, vector<1x32x32xf32>
    %1 = vector.shape_cast %0 : vector<1x32x32xf32> to vector<32x32xf32>
    %c0_2 = arith.constant 0 : index
    %c0_3 = arith.constant 0 : index
    %2 = vector.load %arg1[%c0_2, %c0_3] : memref<640x32xf32, #tpu.memory_space<vmem>>, vector<640x32xf32>
    %cst = arith.constant dense<0.000000e+00> : vector<32x640xf32>
    %3 = tpu.matmul %1, %2, %cst {dimension_numbers = #tpu.dot_dimension_numbers<[1], [1], [0], [0], [0, 0, 1, 0], [], []>} : vector<32x32xf32>, vector<640x32xf32>, vector<32x640xf32> -> vector<32x640xf32>
    %c0_4 = arith.constant 0 : index
    %c0_5 = arith.constant 0 : index
    %c0_6 = arith.constant 0 : index
    %4 = vector.load %arg3[%c0_4, %c0_5, %c0_6] : memref<6x32x1xf32, #tpu.memory_space<vmem>>, vector<1x32x1xf32>
    %5 = vector.shape_cast %4 : vector<1x32x1xf32> to vector<32x1xf32>
    %6 = vector.broadcast %5 : vector<32x1xf32> to vector<32x640xf32>
    %7 = arith.addf %3, %6 : vector<32x640xf32>
    %cst_7 = arith.constant 0.00999999977 : f32
    %8 = vector.broadcast %cst_7 : f32 to vector<32x640xf32>
    %9 = arith.mulf %8, %7 : vector<32x640xf32>
    %10 = arith.maximumf %7, %9 : vector<32x640xf32>
    %c1 = arith.constant 1 : index
    %c0_8 = arith.constant 0 : index
    %c0_9 = arith.constant 0 : index
    %11 = vector.load %arg2[%c1, %c0_8, %c0_9] : memref<6x32x32xf32, #tpu.memory_space<vmem>>, vector<1x32x32xf32>
    %12 = vector.shape_cast %11 : vector<1x32x32xf32> to vector<32x32xf32>
    %cst_10 = arith.constant dense<0.000000e+00> : vector<32x640xf32>
    %13 = tpu.matmul %12, %10, %cst_10 {dimension_numbers = #tpu.dot_dimension_numbers<[1], [0], [0], [1], [0, 0, 1, 1], [], []>} : vector<32x32xf32>, vector<32x640xf32>, vector<32x640xf32> -> vector<32x640xf32>
    %c1_11 = arith.constant 1 : index
    %c0_12 = arith.constant 0 : index
    %c0_13 = arith.constant 0 : index
    %14 = vector.load %arg3[%c1_11, %c0_12, %c0_13] : memref<6x32x1xf32, #tpu.memory_space<vmem>>, vector<1x32x1xf32>
    %15 = vector.shape_cast %14 : vector<1x32x1xf32> to vector<32x1xf32>
    %16 = vector.broadcast %15 : vector<32x1xf32> to vector<32x640xf32>
    %17 = arith.addf %13, %16 : vector<32x640xf32>
    %cst_14 = arith.constant 0.00999999977 : f32
    %18 = vector.broadcast %cst_14 : f32 to vector<32x640xf32>
    %19 = arith.mulf %18, %17 : vector<32x640xf32>
    %20 = arith.maximumf %17, %19 : vector<32x640xf32>
    %c2 = arith.constant 2 : index
    %c0_15 = arith.constant 0 : index
    %c0_16 = arith.constant 0 : index
    %21 = vector.load %arg2[%c2, %c0_15, %c0_16] : memref<6x32x32xf32, #tpu.memory_space<vmem>>, vector<1x32x32xf32>
    %22 = vector.shape_cast %21 : vector<1x32x32xf32> to vector<32x32xf32>
    %cst_17 = arith.constant dense<0.000000e+00> : vector<32x640xf32>
    %23 = tpu.matmul %22, %20, %cst_17 {dimension_numbers = #tpu.dot_dimension_numbers<[1], [0], [0], [1], [0, 0, 1, 1], [], []>} : vector<32x32xf32>, vector<32x640xf32>, vector<32x640xf32> -> vector<32x640xf32>
    %c2_18 = arith.constant 2 : index
    %c0_19 = arith.constant 0 : index
    %c0_20 = arith.constant 0 : index
    %24 = vector.load %arg3[%c2_18, %c0_19, %c0_20] : memref<6x32x1xf32, #tpu.memory_space<vmem>>, vector<1x32x1xf32>
    %25 = vector.shape_cast %24 : vector<1x32x1xf32> to vector<32x1xf32>
    %26 = vector.broadcast %25 : vector<32x1xf32> to vector<32x640xf32>
    %27 = arith.addf %23, %26 : vector<32x640xf32>
    %cst_21 = arith.constant 0.00999999977 : f32
    %28 = vector.broadcast %cst_21 : f32 to vector<32x640xf32>
    %29 = arith.mulf %28, %27 : vector<32x640xf32>
    %30 = arith.maximumf %27, %29 : vector<32x640xf32>
    %c3 = arith.constant 3 : index
    %c0_22 = arith.constant 0 : index
    %c0_23 = arith.constant 0 : index
    %31 = vector.load %arg2[%c3, %c0_22, %c0_23] : memref<6x32x32xf32, #tpu.memory_space<vmem>>, vector<1x32x32xf32>
    %32 = vector.shape_cast %31 : vector<1x32x32xf32> to vector<32x32xf32>
    %cst_24 = arith.constant dense<0.000000e+00> : vector<32x640xf32>
    %33 = tpu.matmul %32, %30, %cst_24 {dimension_numbers = #tpu.dot_dimension_numbers<[1], [0], [0], [1], [0, 0, 1, 1], [], []>} : vector<32x32xf32>, vector<32x640xf32>, vector<32x640xf32> -> vector<32x640xf32>
    %c3_25 = arith.constant 3 : index
    %c0_26 = arith.constant 0 : index
    %c0_27 = arith.constant 0 : index
    %34 = vector.load %arg3[%c3_25, %c0_26, %c0_27] : memref<6x32x1xf32, #tpu.memory_space<vmem>>, vector<1x32x1xf32>
    %35 = vector.shape_cast %34 : vector<1x32x1xf32> to vector<32x1xf32>
    %36 = vector.broadcast %35 : vector<32x1xf32> to vector<32x640xf32>
    %37 = arith.addf %33, %36 : vector<32x640xf32>
    %cst_28 = arith.constant 0.00999999977 : f32
    %38 = vector.broadcast %cst_28 : f32 to vector<32x640xf32>
    %39 = arith.mulf %38, %37 : vector<32x640xf32>
    %40 = arith.maximumf %37, %39 : vector<32x640xf32>
    %c4 = arith.constant 4 : index
    %c0_29 = arith.constant 0 : index
    %c0_30 = arith.constant 0 : index
    %41 = vector.load %arg2[%c4, %c0_29, %c0_30] : memref<6x32x32xf32, #tpu.memory_space<vmem>>, vector<1x32x32xf32>
    %42 = vector.shape_cast %41 : vector<1x32x32xf32> to vector<32x32xf32>
    %cst_31 = arith.constant dense<0.000000e+00> : vector<32x640xf32>
    %43 = tpu.matmul %42, %40, %cst_31 {dimension_numbers = #tpu.dot_dimension_numbers<[1], [0], [0], [1], [0, 0, 1, 1], [], []>} : vector<32x32xf32>, vector<32x640xf32>, vector<32x640xf32> -> vector<32x640xf32>
    %c4_32 = arith.constant 4 : index
    %c0_33 = arith.constant 0 : index
    %c0_34 = arith.constant 0 : index
    %44 = vector.load %arg3[%c4_32, %c0_33, %c0_34] : memref<6x32x1xf32, #tpu.memory_space<vmem>>, vector<1x32x1xf32>
    %45 = vector.shape_cast %44 : vector<1x32x1xf32> to vector<32x1xf32>
    %46 = vector.broadcast %45 : vector<32x1xf32> to vector<32x640xf32>
    %47 = arith.addf %43, %46 : vector<32x640xf32>
    %cst_35 = arith.constant 0.00999999977 : f32
    %48 = vector.broadcast %cst_35 : f32 to vector<32x640xf32>
    %49 = arith.mulf %48, %47 : vector<32x640xf32>
    %50 = arith.maximumf %47, %49 : vector<32x640xf32>
    %c5 = arith.constant 5 : index
    %c0_36 = arith.constant 0 : index
    %c0_37 = arith.constant 0 : index
    %51 = vector.load %arg2[%c5, %c0_36, %c0_37] : memref<6x32x32xf32, #tpu.memory_space<vmem>>, vector<1x32x32xf32>
    %52 = vector.shape_cast %51 : vector<1x32x32xf32> to vector<32x32xf32>
    %cst_38 = arith.constant dense<0.000000e+00> : vector<32x640xf32>
    %53 = tpu.matmul %52, %50, %cst_38 {dimension_numbers = #tpu.dot_dimension_numbers<[1], [0], [0], [1], [0, 0, 1, 1], [], []>} : vector<32x32xf32>, vector<32x640xf32>, vector<32x640xf32> -> vector<32x640xf32>
    %c5_39 = arith.constant 5 : index
    %c0_40 = arith.constant 0 : index
    %c0_41 = arith.constant 0 : index
    %54 = vector.load %arg3[%c5_39, %c0_40, %c0_41] : memref<6x32x1xf32, #tpu.memory_space<vmem>>, vector<1x32x1xf32>
    %55 = vector.shape_cast %54 : vector<1x32x1xf32> to vector<32x1xf32>
    %56 = vector.broadcast %55 : vector<32x1xf32> to vector<32x640xf32>
    %57 = arith.addf %53, %56 : vector<32x640xf32>
    %58 = vector.extract_strided_slice %57 {offsets = [0, 0], sizes = [16, 640], strides = [1, 1]} : vector<32x640xf32> to vector<16x640xf32>
    %c0_42 = arith.constant 0 : index
    %c0_43 = arith.constant 0 : index
    %59 = vector.load %arg4[%c0_42, %c0_43] : memref<16x640xf32, #tpu.memory_space<vmem>>, vector<16x640xf32>
    tpu.vector_store %arg4[%c0_42, %c0_43], %58 {strides = array<i32>} : memref<16x640xf32, #tpu.memory_space<vmem>>, vector<16x640xf32>,
    return
  }
  func.func @transform_0(%arg0: i32) -> (i32, i32) {
    %c0_i32 = arith.constant 0 : i32
    %c0_i32_0 = arith.constant 0 : i32
    return %arg0, %c0_i32 : i32, i32
  }
  func.func @transform_1(%arg0: i32) -> (i32, i32, i32) {
    %c0_i32 = arith.constant 0 : i32
    %c0_i32_0 = arith.constant 0 : i32
    %c0_i32_1 = arith.constant 0 : i32
    %c0_i32_2 = arith.constant 0 : i32
    return %c0_i32, %c0_i32_0, %c0_i32_1 : i32, i32, i32
  }
  func.func @transform_2(%arg0: i32) -> (i32, i32, i32) {
    %c0_i32 = arith.constant 0 : i32
    %c0_i32_0 = arith.constant 0 : i32
    %c0_i32_1 = arith.constant 0 : i32
    %c0_i32_2 = arith.constant 0 : i32
    return %c0_i32, %c0_i32_0, %c0_i32_1 : i32, i32, i32
  }
  func.func @transform_3(%arg0: i32) -> (i32, i32) {
    %c0_i32 = arith.constant 0 : i32
    %c0_i32_0 = arith.constant 0 : i32
    return %c0_i32, %arg0 : i32, i32
  }
}

</mosaic_0001>

<llo_original>
// kernel: tpu_custom_call.1
$region0: #{tpu_custom_call.1}
  #allocation0 [shape = 'u32[]', space=smem, size = 0x4, offset = 0x4, fixed_abs, tag = 'smem constant byte address 0x4 - core index']
  #allocation1 [shape = 'u32[72,128]{1,0:T(1,128)}', space=vmem, size = 0x9000, scoped, tag = 'internal scratch']
  %s0 = inlined_call_operand.vmem [shape: f32[640,32], index: 0, kind: input, shape index: {}]
  %s1 = inlined_call_operand.vmem [shape: f32[6,32,32], index: 1, kind: input, shape index: {}]
  %s2 = inlined_call_operand.vmem [shape: f32[6,32,1], index: 2, kind: input, shape index: {}]
  %s3 = inlined_call_operand.hbm [shape: f32[16,640], index: 3, kind: output, shape index: {}]
  %s4 = sld [smem:[#allocation0]]
  $region22: #{tpu_custom_call.1} parent=0
    _
  %s6 = ssub.s32 1, %s4
  %s7 = scalar_select 0, %s6, %s4
  $region1: #{tpu_custom_call.1} parent=0
    #allocation2 [shape = 'u8[40960]{0}', space=vmem, size = 0xa000, scoped, tag = 'output window, operand 0, single buffered']
    #allocation3 [shape = 's32[1]{0}', space=sflag, size = 0x4, scoped, tag = 'scoped memory for tpu_custom_call.1']
    %8 = vsyncpa [#allocation3], 0
    // Predicated region
    $region2: #{tpu_custom_call.1} parent=1 // pred_check
      _
    $region3: #{tpu_custom_call.1} parent=1 // pred_check_branch
      %10 = sbr.rel (0) target = $region5
    $region4: #{tpu_custom_call.1} parent=1 // pred_region
      _
    $region5: #{tpu_custom_call.1} parent=1 // pred_fallthru
      _
    // Predicated region
    $region6: #{tpu_custom_call.1} parent=1 // pred_check
      _
    $region7: #{tpu_custom_call.1} parent=1 // pred_check_branch
      %12 = sbr.rel (0) target = $region9
    $region8: #{tpu_custom_call.1} parent=1 // pred_region
      _
    $region9: #{tpu_custom_call.1} parent=1 // pred_fallthru
      _
    // Predicated region
    $region10: #{tpu_custom_call.1} parent=1 // pred_check
      _
    $region11: #{tpu_custom_call.1} parent=1 // pred_check_branch
      %14 = sbr.rel (0) target = $region13
    $region12: #{tpu_custom_call.1} parent=1 // pred_region
      _
    $region13: #{tpu_custom_call.1} parent=1 // pred_fallthru
      _
    %v15 = vld [vmem:[%s1] sm:$0xff]
    %v16 = vld [vmem:[%s1 + $0x8] sm:$0xff]
    %v17 = vld [vmem:[%s1 + $0x10] sm:$0xff]
    %v18 = vld [vmem:[%s1 + $0x18] sm:$0xff]
    %v19 = vld [vmem:[%s0] sm:$0xff]
    %v20 = vld [vmem:[%s0 + $0x8] sm:$0xff]
    %v21 = vld [vmem:[%s0 + $0x10] sm:$0xff]
    %v22 = vld [vmem:[%s0 + $0x18] sm:$0xff]
    %v23 = vld [vmem:[%s0 + $0x20] sm:$0xff]
    %v24 = vld [vmem:[%s0 + $0x28] sm:$0xff]
    %v25 = vld [vmem:[%s0 + $0x30] sm:$0xff]
    %v26 = vld [vmem:[%s0 + $0x38] sm:$0xff]
    %v27 = vld [vmem:[%s0 + $0x40] sm:$0xff]
    %v28 = vld [vmem:[%s0 + $0x48] sm:$0xff]
    %v29 = vld [vmem:[%s0 + $0x50] sm:$0xff]
    %v30 = vld [vmem:[%s0 + $0x58] sm:$0xff]
    %v31 = vld [vmem:[%s0 + $0x60] sm:$0xff]
    %v32 = vld [vmem:[%s0 + $0x68] sm:$0xff]
    %v33 = vld [vmem:[%s0 + $0x70] sm:$0xff]
    %v34 = vld [vmem:[%s0 + $0x78] sm:$0xff]
    %v35 = vld [vmem:[%s0 + $0x80] sm:$0xff]
    %v36 = vld [vmem:[%s0 + $0x88] sm:$0xff]
    %v37 = vld [vmem:[%s0 + $0x90] sm:$0xff]
    %v38 = vld [vmem:[%s0 + $0x98] sm:$0xff]
    %v39 = vld [vmem:[%s0 + $0xa0] sm:$0xff]
    %v40 = vld [vmem:[%s0 + $0xa8] sm:$0xff]
    %v41 = vld [vmem:[%s0 + $0xb0] sm:$0xff]
    %v42 = vld [vmem:[%s0 + $0xb8] sm:$0xff]
    %v43 = vld [vmem:[%s0 + $0xc0] sm:$0xff]
    %v44 = vld [vmem:[%s0 + $0xc8] sm:$0xff]
    %v45 = vld [vmem:[%s0 + $0xd0] sm:$0xff]
    %v46 = vld [vmem:[%s0 + $0xd8] sm:$0xff]
    %v47 = vld [vmem:[%s0 + $0xe0] sm:$0xff]
    %v48 = vld [vmem:[%s0 + $0xe8] sm:$0xff]
    %v49 = vld [vmem:[%s0 + $0xf0] sm:$0xff]
    %v50 = vld [vmem:[%s0 + $0xf8] sm:$0xff]
    %v51 = vld [vmem:[%s0 + $0x100] sm:$0xff]
    %v52 = vld [vmem:[%s0 + $0x108] sm:$0xff]
    %v53 = vld [vmem:[%s0 + $0x110] sm:$0xff]
    %v54 = vld [vmem:[%s0 + $0x118] sm:$0xff]
    %v55 = vld [vmem:[%s0 + $0x120] sm:$0xff]
    %v56 = vld [vmem:[%s0 + $0x128] sm:$0xff]
    %v57 = vld [vmem:[%s0 + $0x130] sm:$0xff]
    %v58 = vld [vmem:[%s0 + $0x138] sm:$0xff]
    %v59 = vld [vmem:[%s0 + $0x140] sm:$0xff]
    %v60 = vld [vmem:[%s0 + $0x148] sm:$0xff]
    %v61 = vld [vmem:[%s0 + $0x150] sm:$0xff]
    %v62 = vld [vmem:[%s0 + $0x158] sm:$0xff]
    %v63 = vld [vmem:[%s0 + $0x160] sm:$0xff]
    %v64 = vld [vmem:[%s0 + $0x168] sm:$0xff]
    %v65 = vld [vmem:[%s0 + $0x170] sm:$0xff]
    %v66 = vld [vmem:[%s0 + $0x178] sm:$0xff]
    %v67 = vld [vmem:[%s0 + $0x180] sm:$0xff]
    %v68 = vld [vmem:[%s0 + $0x188] sm:$0xff]
    %v69 = vld [vmem:[%s0 + $0x190] sm:$0xff]
    %v70 = vld [vmem:[%s0 + $0x198] sm:$0xff]
    %v71 = vld [vmem:[%s0 + $0x1a0] sm:$0xff]
    %v72 = vld [vmem:[%s0 + $0x1a8] sm:$0xff]
    %v73 = vld [vmem:[%s0 + $0x1b0] sm:$0xff]
    %v74 = vld [vmem:[%s0 + $0x1b8] sm:$0xff]
    %v75 = vld [vmem:[%s0 + $0x1c0] sm:$0xff]
    %v76 = vld [vmem:[%s0 + $0x1c8] sm:$0xff]
    %v77 = vld [vmem:[%s0 + $0x1d0] sm:$0xff]
    %v78 = vld [vmem:[%s0 + $0x1d8] sm:$0xff]
    %v79 = vld [vmem:[%s0 + $0x1e0] sm:$0xff]
    %v80 = vld [vmem:[%s0 + $0x1e8] sm:$0xff]
    %v81 = vld [vmem:[%s0 + $0x1f0] sm:$0xff]
    %v82 = vld [vmem:[%s0 + $0x1f8] sm:$0xff]
    %v83 = vld [vmem:[%s0 + $0x200] sm:$0xff]
    %v84 = vld [vmem:[%s0 + $0x208] sm:$0xff]
    %v85 = vld [vmem:[%s0 + $0x210] sm:$0xff]
    %v86 = vld [vmem:[%s0 + $0x218] sm:$0xff]
    %v87 = vld [vmem:[%s0 + $0x220] sm:$0xff]
    %v88 = vld [vmem:[%s0 + $0x228] sm:$0xff]
    %v89 = vld [vmem:[%s0 + $0x230] sm:$0xff]
    %v90 = vld [vmem:[%s0 + $0x238] sm:$0xff]
    %v91 = vld [vmem:[%s0 + $0x240] sm:$0xff]
    %v92 = vld [vmem:[%s0 + $0x248] sm:$0xff]
    %v93 = vld [vmem:[%s0 + $0x250] sm:$0xff]
    %v94 = vld [vmem:[%s0 + $0x258] sm:$0xff]
    %v95 = vld [vmem:[%s0 + $0x260] sm:$0xff]
    %v96 = vld [vmem:[%s0 + $0x268] sm:$0xff]
    %v97 = vld [vmem:[%s0 + $0x270] sm:$0xff]
    %v98 = vld [vmem:[%s0 + $0x278] sm:$0xff]
    %v99 = vld [vmem:[%s2] sm:$0xff]
    %v100 = vld [vmem:[%s2 + $0x8] sm:$0xff]
    %v101 = vld [vmem:[%s2 + $0x10] sm:$0xff]
    %v102 = vld [vmem:[%s2 + $0x18] sm:$0xff]
    %104 = vset.pattern.permute.xlu0 0
    %105 = vperm.xlu0 %104, %v99
    %v106 = vpop.permute.xlu0 %105
    %109 = vset.pattern.permute.xlu0 0
    %110 = vperm.xlu0 %109, %v100
    %v111 = vpop.permute.xlu0 %110
    %114 = vset.pattern.permute.xlu0 0
    %115 = vperm.xlu0 %114, %v101
    %v116 = vpop.permute.xlu0 %115
    %119 = vset.pattern.permute.xlu0 0
    %120 = vperm.xlu0 %119, %v102
    %v121 = vpop.permute.xlu0 %120
    %vm123 = vcmask 261120
    %v125 = vsel %vm123, %v15, 0
    %v128 = vsel %vm123, %v16, 0
    %v131 = vsel %vm123, %v17, 0
    %v134 = vsel %vm123, %v18, 0
    %v137 = vsel %vm123, %v19, 0
    %v140 = vsel %vm123, %v20, 0
    %v143 = vsel %vm123, %v21, 0
    %v146 = vsel %vm123, %v22, 0
    %v149 = vsel %vm123, %v23, 0
    %v152 = vsel %vm123, %v24, 0
    %v155 = vsel %vm123, %v25, 0
    %v158 = vsel %vm123, %v26, 0
    %v161 = vsel %vm123, %v27, 0
    %v164 = vsel %vm123, %v28, 0
    %v167 = vsel %vm123, %v29, 0
    %v170 = vsel %vm123, %v30, 0
    %v173 = vsel %vm123, %v31, 0
    %v176 = vsel %vm123, %v32, 0
    %v179 = vsel %vm123, %v33, 0
    %v182 = vsel %vm123, %v34, 0
    %v185 = vsel %vm123, %v35, 0
    %v188 = vsel %vm123, %v36, 0
    %v191 = vsel %vm123, %v37, 0
    %v194 = vsel %vm123, %v38, 0
    %v197 = vsel %vm123, %v39, 0
    %v200 = vsel %vm123, %v40, 0
    %v203 = vsel %vm123, %v41, 0
    %v206 = vsel %vm123, %v42, 0
    %v209 = vsel %vm123, %v43, 0
    %v212 = vsel %vm123, %v44, 0
    %v215 = vsel %vm123, %v45, 0
    %v218 = vsel %vm123, %v46, 0
    %v221 = vsel %vm123, %v47, 0
    %v224 = vsel %vm123, %v48, 0
    %v227 = vsel %vm123, %v49, 0
    %v230 = vsel %vm123, %v50, 0
    %v233 = vsel %vm123, %v51, 0
    %v236 = vsel %vm123, %v52, 0
    %v239 = vsel %vm123, %v53, 0
    %v242 = vsel %vm123, %v54, 0
    %v245 = vsel %vm123, %v55, 0
    %v248 = vsel %vm123, %v56, 0
    %v251 = vsel %vm123, %v57, 0
    %v254 = vsel %vm123, %v58, 0
    %v257 = vsel %vm123, %v59, 0
    %v260 = vsel %vm123, %v60, 0
    %v263 = vsel %vm123, %v61, 0
    %v266 = vsel %vm123, %v62, 0
    %v269 = vsel %vm123, %v63, 0
    %v272 = vsel %vm123, %v64, 0
    %v275 = vsel %vm123, %v65, 0
    %v278 = vsel %vm123, %v66, 0
    %v281 = vsel %vm123, %v67, 0
    %v284 = vsel %vm123, %v68, 0
    %v287 = vsel %vm123, %v69, 0
    %v290 = vsel %vm123, %v70, 0
    %v293 = vsel %vm123, %v71, 0
    %v296 = vsel %vm123, %v72, 0
    %v299 = vsel %vm123, %v73, 0
    %v302 = vsel %vm123, %v74, 0
    %v305 = vsel %vm123, %v75, 0
    %v308 = vsel %vm123, %v76, 0
    %v311 = vsel %vm123, %v77, 0
    %v314 = vsel %vm123, %v78, 0
    %v317 = vsel %vm123, %v79, 0
    %v320 = vsel %vm123, %v80, 0
    %v323 = vsel %vm123, %v81, 0
    %v326 = vsel %vm123, %v82, 0
    %v329 = vsel %vm123, %v83, 0
    %v332 = vsel %vm123, %v84, 0
    %v335 = vsel %vm123, %v85, 0
    %v338 = vsel %vm123, %v86, 0
    %v341 = vsel %vm123, %v87, 0
    %v344 = vsel %vm123, %v88, 0
    %v347 = vsel %vm123, %v89, 0
    %v350 = vsel %vm123, %v90, 0
    %v353 = vsel %vm123, %v91, 0
    %v356 = vsel %vm123, %v92, 0
    %v359 = vsel %vm123, %v93, 0
    %v362 = vsel %vm123, %v94, 0
    %v365 = vsel %vm123, %v95, 0
    %v368 = vsel %vm123, %v96, 0
    %v371 = vsel %vm123, %v97, 0
    %v374 = vsel %vm123, %v98, 0
    %376 = vmatpush.xpose.msra.mxu0 %v182
    %377 = vmatpush.xpose.msra.mxu0 %v179
    %378 = vmatpush.xpose.msra.mxu0 %v176
    %379 = vmatpush.xpose.msra.mxu0 %v173
    %380 = vmatpush.xpose.msra.mxu0 %v170
    %381 = vmatpush.xpose.msra.mxu0 %v167
    %382 = vmatpush.xpose.msra.mxu0 %v164
    %383 = vmatpush.xpose.msra.mxu0 %v161
    %384 = vmatpush.xpose.msra.mxu0 %v158
    %385 = vmatpush.xpose.msra.mxu0 %v155
    %386 = vmatpush.xpose.msra.mxu0 %v152
    %387 = vmatpush.xpose.msra.mxu0 %v149
    %388 = vmatpush.xpose.msra.mxu0 %v146
    %389 = vmatpush.xpose.msra.mxu0 %v143
    %390 = vmatpush.xpose.msra.mxu0 %v140
    %391 = vmatpush.xpose.msra.mxu0 %v137
    %392 = vmatmul.f32.gmra.mxu0 %v125
    %v393 = vpop.f32.mrf.mxu0
    %v394 = vadd.f32 %v106, %v393
    %395 = vmatmul.f32.gmra.mxu0 %v128
    %v396 = vpop.f32.mrf.mxu0
    %v397 = vadd.f32 %v111, %v396
    %398 = vmatmul.f32.gmra.mxu0 %v131
    %v399 = vpop.f32.mrf.mxu0
    %v400 = vadd.f32 %v116, %v399
    %401 = vmatmul.f32.gmra.mxu0 %v134
    %v402 = vpop.f32.mrf.mxu0
    %v403 = vadd.f32 %v121, %v402
    %404 = vdwg.mxu0
    %405 = vmatpush.xpose.msra.mxu0 %v230
    %406 = vmatpush.xpose.msra.mxu0 %v227
    %407 = vmatpush.xpose.msra.mxu0 %v224
    %408 = vmatpush.xpose.msra.mxu0 %v221
    %409 = vmatpush.xpose.msra.mxu0 %v218
    %410 = vmatpush.xpose.msra.mxu0 %v215
    %411 = vmatpush.xpose.msra.mxu0 %v212
    %412 = vmatpush.xpose.msra.mxu0 %v209
    %413 = vmatpush.xpose.msra.mxu0 %v206
    %414 = vmatpush.xpose.msra.mxu0 %v203
    %415 = vmatpush.xpose.msra.mxu0 %v200
    %416 = vmatpush.xpose.msra.mxu0 %v197
    %417 = vmatpush.xpose.msra.mxu0 %v194
    %418 = vmatpush.xpose.msra.mxu0 %v191
    %419 = vmatpush.xpose.msra.mxu0 %v188
    %420 = vmatpush.xpose.msra.mxu0 %v185
    %421 = vmatmul.f32.gmra.mxu0 %v125
    %v422 = vpop.f32.mrf.mxu0
    %v423 = vadd.f32 %v106, %v422
    %424 = vmatmul.f32.gmra.mxu0 %v128
    %v425 = vpop.f32.mrf.mxu0
    %v426 = vadd.f32 %v111, %v425
    %427 = vmatmul.f32.gmra.mxu0 %v131
    %v428 = vpop.f32.mrf.mxu0
    %v429 = vadd.f32 %v116, %v428
    %430 = vmatmul.f32.gmra.mxu0 %v134
    %v431 = vpop.f32.mrf.mxu0
    %v432 = vadd.f32 %v121, %v431
    %433 = vdwg.mxu0
    %434 = vmatpush.xpose.msra.mxu0 %v278
    %435 = vmatpush.xpose.msra.mxu0 %v275
    %436 = vmatpush.xpose.msra.mxu0 %v272
    %437 = vmatpush.xpose.msra.mxu0 %v269
    %438 = vmatpush.xpose.msra.mxu0 %v266
    %439 = vmatpush.xpose.msra.mxu0 %v263
    %440 = vmatpush.xpose.msra.mxu0 %v260
    %441 = vmatpush.xpose.msra.mxu0 %v257
    %442 = vmatpush.xpose.msra.mxu0 %v254
    %443 = vmatpush.xpose.msra.mxu0 %v251
    %444 = vmatpush.xpose.msra.mxu0 %v248
    %445 = vmatpush.xpose.msra.mxu0 %v245
    %446 = vmatpush.xpose.msra.mxu0 %v242
    %447 = vmatpush.xpose.msra.mxu0 %v239
    %448 = vmatpush.xpose.msra.mxu0 %v236
    %449 = vmatpush.xpose.msra.mxu0 %v233
    %450 = vmatmul.f32.gmra.mxu0 %v125
    %v451 = vpop.f32.mrf.mxu0
    %v452 = vadd.f32 %v106, %v451
    %453 = vmatmul.f32.gmra.mxu0 %v128
    %v454 = vpop.f32.mrf.mxu0
    %v455 = vadd.f32 %v111, %v454
    %456 = vmatmul.f32.gmra.mxu0 %v131
    %v457 = vpop.f32.mrf.mxu0
    %v458 = vadd.f32 %v116, %v457
    %459 = vmatmul.f32.gmra.mxu0 %v134
    %v460 = vpop.f32.mrf.mxu0
    %v461 = vadd.f32 %v121, %v460
    %462 = vdwg.mxu0
    %463 = vmatpush.xpose.msra.mxu0 %v326
    %464 = vmatpush.xpose.msra.mxu0 %v323
    %465 = vmatpush.xpose.msra.mxu0 %v320
    %466 = vmatpush.xpose.msra.mxu0 %v317
    %467 = vmatpush.xpose.msra.mxu0 %v314
    %468 = vmatpush.xpose.msra.mxu0 %v311
    %469 = vmatpush.xpose.msra.mxu0 %v308
    %470 = vmatpush.xpose.msra.mxu0 %v305
    %471 = vmatpush.xpose.msra.mxu0 %v302
    %472 = vmatpush.xpose.msra.mxu0 %v299
    %473 = vmatpush.xpose.msra.mxu0 %v296
    %474 = vmatpush.xpose.msra.mxu0 %v293
    %475 = vmatpush.xpose.msra.mxu0 %v290
    %476 = vmatpush.xpose.msra.mxu0 %v287
    %477 = vmatpush.xpose.msra.mxu0 %v284
    %478 = vmatpush.xpose.msra.mxu0 %v281
    %479 = vmatmul.f32.gmra.mxu0 %v125
    %v480 = vpop.f32.mrf.mxu0
    %v481 = vadd.f32 %v106, %v480
    %482 = vmatmul.f32.gmra.mxu0 %v128
    %v483 = vpop.f32.mrf.mxu0
    %v484 = vadd.f32 %v111, %v483
    %485 = vmatmul.f32.gmra.mxu0 %v131
    %v486 = vpop.f32.mrf.mxu0
    %v487 = vadd.f32 %v116, %v486
    %488 = vmatmul.f32.gmra.mxu0 %v134
    %v489 = vpop.f32.mrf.mxu0
    %v490 = vadd.f32 %v121, %v489
    %491 = vdwg.mxu0
    %492 = vmatpush.xpose.msra.mxu0 %v374
    %493 = vmatpush.xpose.msra.mxu0 %v371
    %494 = vmatpush.xpose.msra.mxu0 %v368
    %495 = vmatpush.xpose.msra.mxu0 %v365
    %496 = vmatpush.xpose.msra.mxu0 %v362
    %497 = vmatpush.xpose.msra.mxu0 %v359
    %498 = vmatpush.xpose.msra.mxu0 %v356
    %499 = vmatpush.xpose.msra.mxu0 %v353
    %500 = vmatpush.xpose.msra.mxu0 %v350
    %501 = vmatpush.xpose.msra.mxu0 %v347
    %502 = vmatpush.xpose.msra.mxu0 %v344
    %503 = vmatpush.xpose.msra.mxu0 %v341
    %504 = vmatpush.xpose.msra.mxu0 %v338
    %505 = vmatpush.xpose.msra.mxu0 %v335
    %506 = vmatpush.xpose.msra.mxu0 %v332
    %507 = vmatpush.xpose.msra.mxu0 %v329
    %508 = vmatmul.f32.gmra.mxu0 %v125
    %v509 = vpop.f32.mrf.mxu0
    %v510 = vadd.f32 %v106, %v509
    %511 = vmatmul.f32.gmra.mxu0 %v128
    %v512 = vpop.f32.mrf.mxu0
    %v513 = vadd.f32 %v111, %v512
    %514 = vmatmul.f32.gmra.mxu0 %v131
    %v515 = vpop.f32.mrf.mxu0
    %v516 = vadd.f32 %v116, %v515
    %517 = vmatmul.f32.gmra.mxu0 %v134
    %v518 = vpop.f32.mrf.mxu0
    %v519 = vadd.f32 %v121, %v518
    %520 = vdwg.mxu0
    %v521 = vmul.f32 %v394, 0.01
    %v522 = vmul.f32 %v423, 0.01
    %v523 = vmul.f32 %v452, 0.01
    %v524 = vmul.f32 %v481, 0.01
    %v525 = vmul.f32 %v510, 0.01
    %v526 = vmul.f32 %v397, 0.01
    %v527 = vmul.f32 %v426, 0.01
    %v528 = vmul.f32 %v455, 0.01
    %v529 = vmul.f32 %v484, 0.01
    %v530 = vmul.f32 %v513, 0.01
    %v531 = vmul.f32 %v400, 0.01
    %v532 = vmul.f32 %v429, 0.01
    %v533 = vmul.f32 %v458, 0.01
    %v534 = vmul.f32 %v487, 0.01
    %v535 = vmul.f32 %v516, 0.01
    %v536 = vmul.f32 %v403, 0.01
    %v537 = vmul.f32 %v432, 0.01
    %v538 = vmul.f32 %v461, 0.01
    %v539 = vmul.f32 %v490, 0.01
    %v540 = vmul.f32 %v519, 0.01
    %v541 = vmax.f32 %v394, %v521
    %v542 = vmax.f32 %v423, %v522
    %v543 = vmax.f32 %v452, %v523
    %v544 = vmax.f32 %v481, %v524
    %v545 = vmax.f32 %v510, %v525
    %v546 = vmax.f32 %v397, %v526
    %v547 = vmax.f32 %v426, %v527
    %v548 = vmax.f32 %v455, %v528
    %v549 = vmax.f32 %v484, %v529
    %v550 = vmax.f32 %v513, %v530
    %v551 = vmax.f32 %v400, %v531
    %v552 = vmax.f32 %v429, %v532
    %v553 = vmax.f32 %v458, %v533
    %v554 = vmax.f32 %v487, %v534
    %v555 = vmax.f32 %v516, %v535
    %v556 = vmax.f32 %v403, %v536
    %v557 = vmax.f32 %v432, %v537
    %v558 = vmax.f32 %v461, %v538
    %v559 = vmax.f32 %v490, %v539
    %v560 = vmax.f32 %v519, %v540
    %s561 = scalar_lea.vmem %s1, 32
    %v562 = vld [vmem:[%s561] sm:$0xff]
    %v563 = vld [vmem:[%s561 + $0x8] sm:$0xff]
    %v564 = vld [vmem:[%s561 + $0x10] sm:$0xff]
    %v565 = vld [vmem:[%s561 + $0x18] sm:$0xff]
    %s566 = scalar_lea.vmem %s2, 32
    %v567 = vld [vmem:[%s566] sm:$0xff]
    %v568 = vld [vmem:[%s566 + $0x8] sm:$0xff]
    %v569 = vld [vmem:[%s566 + $0x10] sm:$0xff]
    %v570 = vld [vmem:[%s566 + $0x18] sm:$0xff]
    %572 = vset.pattern.permute.xlu0 0
    %573 = vperm.xlu0 %572, %v567
    %v574 = vpop.permute.xlu0 %573
    %577 = vset.pattern.permute.xlu0 0
    %578 = vperm.xlu0 %577, %v568
    %v579 = vpop.permute.xlu0 %578
    %582 = vset.pattern.permute.xlu0 0
    %583 = vperm.xlu0 %582, %v569
    %v584 = vpop.permute.xlu0 %583
    %587 = vset.pattern.permute.xlu0 0
    %588 = vperm.xlu0 %587, %v570
    %v589 = vpop.permute.xlu0 %588
    %v592 = vsel %vm123, %v562, 0
    %v595 = vsel %vm123, %v563, 0
    %v598 = vsel %vm123, %v564, 0
    %v601 = vsel %vm123, %v565, 0
    %603 = vmatpush.msra.mxu0 0.0
    %604 = vmatpush.msra.mxu0 0.0
    %605 = vmatpush.msra.mxu0 0.0
    %606 = vmatpush.msra.mxu0 0.0
    %607 = vmatpush.msra.mxu0 0.0
    %608 = vmatpush.msra.mxu0 0.0
    %609 = vmatpush.msra.mxu0 0.0
    %610 = vmatpush.msra.mxu0 0.0
    %611 = vmatpush.msra.mxu0 0.0
    %612 = vmatpush.msra.mxu0 0.0
    %613 = vmatpush.msra.mxu0 0.0
    %614 = vmatpush.msra.mxu0 0.0
    %615 = vmatpush.msra.mxu0 %v556
    %616 = vmatpush.msra.mxu0 %v551
    %617 = vmatpush.msra.mxu0 %v546
    %618 = vmatpush.msra.mxu0 %v541
    %619 = vmatmul.f32.gmra.mxu0 %v592
    %v620 = vpop.f32.mrf.mxu0
    %v621 = vadd.f32 %v574, %v620
    %622 = vmatmul.f32.gmra.mxu0 %v595
    %v623 = vpop.f32.mrf.mxu0
    %v624 = vadd.f32 %v579, %v623
    %625 = vmatmul.f32.gmra.mxu0 %v598
    %v626 = vpop.f32.mrf.mxu0
    %v627 = vadd.f32 %v584, %v626
    %628 = vmatmul.f32.gmra.mxu0 %v601
    %v629 = vpop.f32.mrf.mxu0
    %v630 = vadd.f32 %v589, %v629
    %631 = vdwg.mxu0
    %632 = vmatpush.msra.mxu0 0.0
    %633 = vmatpush.msra.mxu0 0.0
    %634 = vmatpush.msra.mxu0 0.0
    %635 = vmatpush.msra.mxu0 0.0
    %636 = vmatpush.msra.mxu0 0.0
    %637 = vmatpush.msra.mxu0 0.0
    %638 = vmatpush.msra.mxu0 0.0
    %639 = vmatpush.msra.mxu0 0.0
    %640 = vmatpush.msra.mxu0 0.0
    %641 = vmatpush.msra.mxu0 0.0
    %642 = vmatpush.msra.mxu0 0.0
    %643 = vmatpush.msra.mxu0 0.0
    %644 = vmatpush.msra.mxu0 %v557
    %645 = vmatpush.msra.mxu0 %v552
    %646 = vmatpush.msra.mxu0 %v547
    %647 = vmatpush.msra.mxu0 %v542
    %648 = vmatmul.f32.gmra.mxu0 %v592
    %v649 = vpop.f32.mrf.mxu0
    %v650 = vadd.f32 %v574, %v649
    %651 = vmatmul.f32.gmra.mxu0 %v595
    %v652 = vpop.f32.mrf.mxu0
    %v653 = vadd.f32 %v579, %v652
    %654 = vmatmul.f32.gmra.mxu0 %v598
    %v655 = vpop.f32.mrf.mxu0
    %v656 = vadd.f32 %v584, %v655
    %657 = vmatmul.f32.gmra.mxu0 %v601
    %v658 = vpop.f32.mrf.mxu0
    %v659 = vadd.f32 %v589, %v658
    %660 = vdwg.mxu0
    %661 = vmatpush.msra.mxu0 0.0
    %662 = vmatpush.msra.mxu0 0.0
    %663 = vmatpush.msra.mxu0 0.0
    %664 = vmatpush.msra.mxu0 0.0
    %665 = vmatpush.msra.mxu0 0.0
    %666 = vmatpush.msra.mxu0 0.0
    %667 = vmatpush.msra.mxu0 0.0
    %668 = vmatpush.msra.mxu0 0.0
    %669 = vmatpush.msra.mxu0 0.0
    %670 = vmatpush.msra.mxu0 0.0
    %671 = vmatpush.msra.mxu0 0.0
    %672 = vmatpush.msra.mxu0 0.0
    %673 = vmatpush.msra.mxu0 %v558
    %674 = vmatpush.msra.mxu0 %v553
    %675 = vmatpush.msra.mxu0 %v548
    %676 = vmatpush.msra.mxu0 %v543
    %677 = vmatmul.f32.gmra.mxu0 %v592
    %v678 = vpop.f32.mrf.mxu0
    %v679 = vadd.f32 %v574, %v678
    %680 = vmatmul.f32.gmra.mxu0 %v595
    %v681 = vpop.f32.mrf.mxu0
    %v682 = vadd.f32 %v579, %v681
    %683 = vmatmul.f32.gmra.mxu0 %v598
    %v684 = vpop.f32.mrf.mxu0
    %v685 = vadd.f32 %v584, %v684
    %686 = vmatmul.f32.gmra.mxu0 %v601
    %v687 = vpop.f32.mrf.mxu0
    %v688 = vadd.f32 %v589, %v687
    %689 = vdwg.mxu0
    %690 = vmatpush.msra.mxu0 0.0
    %691 = vmatpush.msra.mxu0 0.0
    %692 = vmatpush.msra.mxu0 0.0
    %693 = vmatpush.msra.mxu0 0.0
    %694 = vmatpush.msra.mxu0 0.0
    %695 = vmatpush.msra.mxu0 0.0
    %696 = vmatpush.msra.mxu0 0.0
    %697 = vmatpush.msra.mxu0 0.0
    %698 = vmatpush.msra.mxu0 0.0
    %699 = vmatpush.msra.mxu0 0.0
    %700 = vmatpush.msra.mxu0 0.0
    %701 = vmatpush.msra.mxu0 0.0
    %702 = vmatpush.msra.mxu0 %v559
    %703 = vmatpush.msra.mxu0 %v554
    %704 = vmatpush.msra.mxu0 %v549
    %705 = vmatpush.msra.mxu0 %v544
    %706 = vmatmul.f32.gmra.mxu0 %v592
    %v707 = vpop.f32.mrf.mxu0
    %v708 = vadd.f32 %v574, %v707
    %709 = vmatmul.f32.gmra.mxu0 %v595
    %v710 = vpop.f32.mrf.mxu0
    %v711 = vadd.f32 %v579, %v710
    %712 = vmatmul.f32.gmra.mxu0 %v598
    %v713 = vpop.f32.mrf.mxu0
    %v714 = vadd.f32 %v584, %v713
    %715 = vmatmul.f32.gmra.mxu0 %v601
    %v716 = vpop.f32.mrf.mxu0
    %v717 = vadd.f32 %v589, %v716
    %718 = vdwg.mxu0
    %719 = vmatpush.msra.mxu0 0.0
    %720 = vmatpush.msra.mxu0 0.0
    %721 = vmatpush.msra.mxu0 0.0
    %722 = vmatpush.msra.mxu0 0.0
    %723 = vmatpush.msra.mxu0 0.0
    %724 = vmatpush.msra.mxu0 0.0
    %725 = vmatpush.msra.mxu0 0.0
    %726 = vmatpush.msra.mxu0 0.0
    %727 = vmatpush.msra.mxu0 0.0
    %728 = vmatpush.msra.mxu0 0.0
    %729 = vmatpush.msra.mxu0 0.0
    %730 = vmatpush.msra.mxu0 0.0
    %731 = vmatpush.msra.mxu0 %v560
    %732 = vmatpush.msra.mxu0 %v555
    %733 = vmatpush.msra.mxu0 %v550
    %734 = vmatpush.msra.mxu0 %v545
    %735 = vmatmul.f32.gmra.mxu0 %v592
    %v736 = vpop.f32.mrf.mxu0
    %v737 = vadd.f32 %v574, %v736
    %738 = vmatmul.f32.gmra.mxu0 %v595
    %v739 = vpop.f32.mrf.mxu0
    %v740 = vadd.f32 %v579, %v739
    %741 = vmatmul.f32.gmra.mxu0 %v598
    %v742 = vpop.f32.mrf.mxu0
    %v743 = vadd.f32 %v584, %v742
    %744 = vmatmul.f32.gmra.mxu0 %v601
    %v745 = vpop.f32.mrf.mxu0
    %v746 = vadd.f32 %v589, %v745
    %747 = vdwg.mxu0
    %v748 = vmul.f32 %v621, 0.01
    %v749 = vmul.f32 %v650, 0.01
    %v750 = vmul.f32 %v679, 0.01
    %v751 = vmul.f32 %v708, 0.01
    %v752 = vmul.f32 %v737, 0.01
    %v753 = vmul.f32 %v624, 0.01
    %v754 = vmul.f32 %v653, 0.01
    %v755 = vmul.f32 %v682, 0.01
    %v756 = vmul.f32 %v711, 0.01
    %v757 = vmul.f32 %v740, 0.01
    %v758 = vmul.f32 %v627, 0.01
    %v759 = vmul.f32 %v656, 0.01
    %v760 = vmul.f32 %v685, 0.01
    %v761 = vmul.f32 %v714, 0.01
    %v762 = vmul.f32 %v743, 0.01
    %v763 = vmul.f32 %v630, 0.01
    %v764 = vmul.f32 %v659, 0.01
    %v765 = vmul.f32 %v688, 0.01
    %v766 = vmul.f32 %v717, 0.01
    %v767 = vmul.f32 %v746, 0.01
    %v768 = vmax.f32 %v621, %v748
    %v769 = vmax.f32 %v650, %v749
    %v770 = vmax.f32 %v679, %v750
    %v771 = vmax.f32 %v708, %v751
    %v772 = vmax.f32 %v737, %v752
    %v773 = vmax.f32 %v624, %v753
    %v774 = vmax.f32 %v653, %v754
    %v775 = vmax.f32 %v682, %v755
    %v776 = vmax.f32 %v711, %v756
    %v777 = vmax.f32 %v740, %v757
    %v778 = vmax.f32 %v627, %v758
    %v779 = vmax.f32 %v656, %v759
    %v780 = vmax.f32 %v685, %v760
    %v781 = vmax.f32 %v714, %v761
    %v782 = vmax.f32 %v743, %v762
    %v783 = vmax.f32 %v630, %v763
    %v784 = vmax.f32 %v659, %v764
    %v785 = vmax.f32 %v688, %v765
    %v786 = vmax.f32 %v717, %v766
    %v787 = vmax.f32 %v746, %v767
    %s788 = scalar_lea.vmem %s1, 64
    %v789 = vld [vmem:[%s788] sm:$0xff]
    %v790 = vld [vmem:[%s788 + $0x8] sm:$0xff]
    %v791 = vld [vmem:[%s788 + $0x10] sm:$0xff]
    %v792 = vld [vmem:[%s788 + $0x18] sm:$0xff]
    %s793 = scalar_lea.vmem %s2, 64
    %v794 = vld [vmem:[%s793] sm:$0xff]
    %v795 = vld [vmem:[%s793 + $0x8] sm:$0xff]
    %v796 = vld [vmem:[%s793 + $0x10] sm:$0xff]
    %v797 = vld [vmem:[%s793 + $0x18] sm:$0xff]
    %799 = vset.pattern.permute.xlu0 0
    %800 = vperm.xlu0 %799, %v794
    %v801 = vpop.permute.xlu0 %800
    %804 = vset.pattern.permute.xlu0 0
    %805 = vperm.xlu0 %804, %v795
    %v806 = vpop.permute.xlu0 %805
    %809 = vset.pattern.permute.xlu0 0
    %810 = vperm.xlu0 %809, %v796
    %v811 = vpop.permute.xlu0 %810
    %814 = vset.pattern.permute.xlu0 0
    %815 = vperm.xlu0 %814, %v797
    %v816 = vpop.permute.xlu0 %815
    %v819 = vsel %vm123, %v789, 0
    %v822 = vsel %vm123, %v790, 0
    %v825 = vsel %vm123, %v791, 0
    %v828 = vsel %vm123, %v792, 0
    %830 = vmatpush.msra.mxu0 0.0
    %831 = vmatpush.msra.mxu0 0.0
    %832 = vmatpush.msra.mxu0 0.0
    %833 = vmatpush.msra.mxu0 0.0
    %834 = vmatpush.msra.mxu0 0.0
    %835 = vmatpush.msra.mxu0 0.0
    %836 = vmatpush.msra.mxu0 0.0
    %837 = vmatpush.msra.mxu0 0.0
    %838 = vmatpush.msra.mxu0 0.0
    %839 = vmatpush.msra.mxu0 0.0
    %840 = vmatpush.msra.mxu0 0.0
    %841 = vmatpush.msra.mxu0 0.0
    %842 = vmatpush.msra.mxu0 %v783
    %843 = vmatpush.msra.mxu0 %v778
    %844 = vmatpush.msra.mxu0 %v773
    %845 = vmatpush.msra.mxu0 %v768
    %846 = vmatmul.f32.gmra.mxu0 %v819
    %v847 = vpop.f32.mrf.mxu0
    %v848 = vadd.f32 %v801, %v847
    %849 = vmatmul.f32.gmra.mxu0 %v822
    %v850 = vpop.f32.mrf.mxu0
    %v851 = vadd.f32 %v806, %v850
    %852 = vmatmul.f32.gmra.mxu0 %v825
    %v853 = vpop.f32.mrf.mxu0
    %v854 = vadd.f32 %v811, %v853
    %855 = vmatmul.f32.gmra.mxu0 %v828
    %v856 = vpop.f32.mrf.mxu0
    %v857 = vadd.f32 %v816, %v856
    %858 = vdwg.mxu0
    %859 = vmatpush.msra.mxu0 0.0
    %860 = vmatpush.msra.mxu0 0.0
    %861 = vmatpush.msra.mxu0 0.0
    %862 = vmatpush.msra.mxu0 0.0
    %863 = vmatpush.msra.mxu0 0.0
    %864 = vmatpush.msra.mxu0 0.0
    %865 = vmatpush.msra.mxu0 0.0
    %866 = vmatpush.msra.mxu0 0.0
    %867 = vmatpush.msra.mxu0 0.0
    %868 = vmatpush.msra.mxu0 0.0
    %869 = vmatpush.msra.mxu0 0.0
    %870 = vmatpush.msra.mxu0 0.0
    %871 = vmatpush.msra.mxu0 %v784
    %872 = vmatpush.msra.mxu0 %v779
    %873 = vmatpush.msra.mxu0 %v774
    %874 = vmatpush.msra.mxu0 %v769
    %875 = vmatmul.f32.gmra.mxu0 %v819
    %v876 = vpop.f32.mrf.mxu0
    %v877 = vadd.f32 %v801, %v876
    %878 = vmatmul.f32.gmra.mxu0 %v822
    %v879 = vpop.f32.mrf.mxu0
    %v880 = vadd.f32 %v806, %v879
    %881 = vmatmul.f32.gmra.mxu0 %v825
    %v882 = vpop.f32.mrf.mxu0
    %v883 = vadd.f32 %v811, %v882
    %884 = vmatmul.f32.gmra.mxu0 %v828
    %v885 = vpop.f32.mrf.mxu0
    %v886 = vadd.f32 %v816, %v885
    %887 = vdwg.mxu0
    %888 = vmatpush.msra.mxu0 0.0
    %889 = vmatpush.msra.mxu0 0.0
    %890 = vmatpush.msra.mxu0 0.0
    %891 = vmatpush.msra.mxu0 0.0
    %892 = vmatpush.msra.mxu0 0.0
    %893 = vmatpush.msra.mxu0 0.0
    %894 = vmatpush.msra.mxu0 0.0
    %895 = vmatpush.msra.mxu0 0.0
    %896 = vmatpush.msra.mxu0 0.0
    %897 = vmatpush.msra.mxu0 0.0
    %898 = vmatpush.msra.mxu0 0.0
    %899 = vmatpush.msra.mxu0 0.0
    %900 = vmatpush.msra.mxu0 %v785
    %901 = vmatpush.msra.mxu0 %v780
    %902 = vmatpush.msra.mxu0 %v775
    %903 = vmatpush.msra.mxu0 %v770
    %904 = vmatmul.f32.gmra.mxu0 %v819
    %v905 = vpop.f32.mrf.mxu0
    %v906 = vadd.f32 %v801, %v905
    %907 = vmatmul.f32.gmra.mxu0 %v822
    %v908 = vpop.f32.mrf.mxu0
    %v909 = vadd.f32 %v806, %v908
    %910 = vmatmul.f32.gmra.mxu0 %v825
    %v911 = vpop.f32.mrf.mxu0
    %v912 = vadd.f32 %v811, %v911
    %913 = vmatmul.f32.gmra.mxu0 %v828
    %v914 = vpop.f32.mrf.mxu0
    %v915 = vadd.f32 %v816, %v914
    %916 = vdwg.mxu0
    %917 = vmatpush.msra.mxu0 0.0
    %918 = vmatpush.msra.mxu0 0.0
    %919 = vmatpush.msra.mxu0 0.0
    %920 = vmatpush.msra.mxu0 0.0
    %921 = vmatpush.msra.mxu0 0.0
    %922 = vmatpush.msra.mxu0 0.0
    %923 = vmatpush.msra.mxu0 0.0
    %924 = vmatpush.msra.mxu0 0.0
    %925 = vmatpush.msra.mxu0 0.0
    %926 = vmatpush.msra.mxu0 0.0
    %927 = vmatpush.msra.mxu0 0.0
    %928 = vmatpush.msra.mxu0 0.0
    %929 = vmatpush.msra.mxu0 %v786
    %930 = vmatpush.msra.mxu0 %v781
    %931 = vmatpush.msra.mxu0 %v776
    %932 = vmatpush.msra.mxu0 %v771
    %933 = vmatmul.f32.gmra.mxu0 %v819
    %v934 = vpop.f32.mrf.mxu0
    %v935 = vadd.f32 %v801, %v934
    %936 = vmatmul.f32.gmra.mxu0 %v822
    %v937 = vpop.f32.mrf.mxu0
    %v938 = vadd.f32 %v806, %v937
    %939 = vmatmul.f32.gmra.mxu0 %v825
    %v940 = vpop.f32.mrf.mxu0
    %v941 = vadd.f32 %v811, %v940
    %942 = vmatmul.f32.gmra.mxu0 %v828
    %v943 = vpop.f32.mrf.mxu0
    %v944 = vadd.f32 %v816, %v943
    %945 = vdwg.mxu0
    %946 = vmatpush.msra.mxu0 0.0
    %947 = vmatpush.msra.mxu0 0.0
    %948 = vmatpush.msra.mxu0 0.0
    %949 = vmatpush.msra.mxu0 0.0
    %950 = vmatpush.msra.mxu0 0.0
    %951 = vmatpush.msra.mxu0 0.0
    %952 = vmatpush.msra.mxu0 0.0
    %953 = vmatpush.msra.mxu0 0.0
    %954 = vmatpush.msra.mxu0 0.0
    %955 = vmatpush.msra.mxu0 0.0
    %956 = vmatpush.msra.mxu0 0.0
    %957 = vmatpush.msra.mxu0 0.0
    %958 = vmatpush.msra.mxu0 %v787
    %959 = vmatpush.msra.mxu0 %v782
    %960 = vmatpush.msra.mxu0 %v777
    %961 = vmatpush.msra.mxu0 %v772
    %962 = vmatmul.f32.gmra.mxu0 %v819
    %v963 = vpop.f32.mrf.mxu0
    %v964 = vadd.f32 %v801, %v963
    %965 = vmatmul.f32.gmra.mxu0 %v822
    %v966 = vpop.f32.mrf.mxu0
    %v967 = vadd.f32 %v806, %v966
    %968 = vmatmul.f32.gmra.mxu0 %v825
    %v969 = vpop.f32.mrf.mxu0
    %v970 = vadd.f32 %v811, %v969
    %971 = vmatmul.f32.gmra.mxu0 %v828
    %v972 = vpop.f32.mrf.mxu0
    %v973 = vadd.f32 %v816, %v972
    %974 = vdwg.mxu0
    %v975 = vmul.f32 %v848, 0.01
    %v976 = vmul.f32 %v877, 0.01
    %v977 = vmul.f32 %v906, 0.01
    %v978 = vmul.f32 %v935, 0.01
    %v979 = vmul.f32 %v964, 0.01
    %v980 = vmul.f32 %v851, 0.01
    %v981 = vmul.f32 %v880, 0.01
    %v982 = vmul.f32 %v909, 0.01
    %v983 = vmul.f32 %v938, 0.01
    %v984 = vmul.f32 %v967, 0.01
    %v985 = vmul.f32 %v854, 0.01
    %v986 = vmul.f32 %v883, 0.01
    %v987 = vmul.f32 %v912, 0.01
    %v988 = vmul.f32 %v941, 0.01
    %v989 = vmul.f32 %v970, 0.01
    %v990 = vmul.f32 %v857, 0.01
    %v991 = vmul.f32 %v886, 0.01
    %v992 = vmul.f32 %v915, 0.01
    %v993 = vmul.f32 %v944, 0.01
    %v994 = vmul.f32 %v973, 0.01
    %v995 = vmax.f32 %v848, %v975
    %v996 = vmax.f32 %v877, %v976
    %v997 = vmax.f32 %v906, %v977
    %v998 = vmax.f32 %v935, %v978
    %v999 = vmax.f32 %v964, %v979
    %v1000 = vmax.f32 %v851, %v980
    %v1001 = vmax.f32 %v880, %v981
    %v1002 = vmax.f32 %v909, %v982
    %v1003 = vmax.f32 %v938, %v983
    %v1004 = vmax.f32 %v967, %v984
    %v1005 = vmax.f32 %v854, %v985
    %v1006 = vmax.f32 %v883, %v986
    %v1007 = vmax.f32 %v912, %v987
    %v1008 = vmax.f32 %v941, %v988
    %v1009 = vmax.f32 %v970, %v989
    %v1010 = vmax.f32 %v857, %v990
    %v1011 = vmax.f32 %v886, %v991
    %v1012 = vmax.f32 %v915, %v992
    %v1013 = vmax.f32 %v944, %v993
    %v1014 = vmax.f32 %v973, %v994
    %s1015 = scalar_lea.vmem %s1, 96
    %v1016 = vld [vmem:[%s1015] sm:$0xff]
    %v1017 = vld [vmem:[%s1015 + $0x8] sm:$0xff]
    %v1018 = vld [vmem:[%s1015 + $0x10] sm:$0xff]
    %v1019 = vld [vmem:[%s1015 + $0x18] sm:$0xff]
    %s1020 = scalar_lea.vmem %s2, 96
    %v1021 = vld [vmem:[%s1020] sm:$0xff]
    %v1022 = vld [vmem:[%s1020 + $0x8] sm:$0xff]
    %v1023 = vld [vmem:[%s1020 + $0x10] sm:$0xff]
    %v1024 = vld [vmem:[%s1020 + $0x18] sm:$0xff]
    %1026 = vset.pattern.permute.xlu0 0
    %1027 = vperm.xlu0 %1026, %v1021
    %v1028 = vpop.permute.xlu0 %1027
    %1031 = vset.pattern.permute.xlu0 0
    %1032 = vperm.xlu0 %1031, %v1022
    %v1033 = vpop.permute.xlu0 %1032
    %1036 = vset.pattern.permute.xlu0 0
    %1037 = vperm.xlu0 %1036, %v1023
    %v1038 = vpop.permute.xlu0 %1037
    %1041 = vset.pattern.permute.xlu0 0
    %1042 = vperm.xlu0 %1041, %v1024
    %v1043 = vpop.permute.xlu0 %1042
    %v1046 = vsel %vm123, %v1016, 0
    %v1049 = vsel %vm123, %v1017, 0
    %v1052 = vsel %vm123, %v1018, 0
    %v1055 = vsel %vm123, %v1019, 0
    %1057 = vmatpush.msra.mxu0 0.0
    %1058 = vmatpush.msra.mxu0 0.0
    %1059 = vmatpush.msra.mxu0 0.0
    %1060 = vmatpush.msra.mxu0 0.0
    %1061 = vmatpush.msra.mxu0 0.0
    %1062 = vmatpush.msra.mxu0 0.0
    %1063 = vmatpush.msra.mxu0 0.0
    %1064 = vmatpush.msra.mxu0 0.0
    %1065 = vmatpush.msra.mxu0 0.0
    %1066 = vmatpush.msra.mxu0 0.0
    %1067 = vmatpush.msra.mxu0 0.0
    %1068 = vmatpush.msra.mxu0 0.0
    %1069 = vmatpush.msra.mxu0 %v1010
    %1070 = vmatpush.msra.mxu0 %v1005
    %1071 = vmatpush.msra.mxu0 %v1000
    %1072 = vmatpush.msra.mxu0 %v995
    %1073 = vmatmul.f32.gmra.mxu0 %v1046
    %v1074 = vpop.f32.mrf.mxu0
    %v1075 = vadd.f32 %v1028, %v1074
    %1076 = vmatmul.f32.gmra.mxu0 %v1049
    %v1077 = vpop.f32.mrf.mxu0
    %v1078 = vadd.f32 %v1033, %v1077
    %1079 = vmatmul.f32.gmra.mxu0 %v1052
    %v1080 = vpop.f32.mrf.mxu0
    %v1081 = vadd.f32 %v1038, %v1080
    %1082 = vmatmul.f32.gmra.mxu0 %v1055
    %v1083 = vpop.f32.mrf.mxu0
    %v1084 = vadd.f32 %v1043, %v1083
    %1085 = vdwg.mxu0
    %1086 = vmatpush.msra.mxu0 0.0
    %1087 = vmatpush.msra.mxu0 0.0
    %1088 = vmatpush.msra.mxu0 0.0
    %1089 = vmatpush.msra.mxu0 0.0
    %1090 = vmatpush.msra.mxu0 0.0
    %1091 = vmatpush.msra.mxu0 0.0
    %1092 = vmatpush.msra.mxu0 0.0
    %1093 = vmatpush.msra.mxu0 0.0
    %1094 = vmatpush.msra.mxu0 0.0
    %1095 = vmatpush.msra.mxu0 0.0
    %1096 = vmatpush.msra.mxu0 0.0
    %1097 = vmatpush.msra.mxu0 0.0
    %1098 = vmatpush.msra.mxu0 %v1011
    %1099 = vmatpush.msra.mxu0 %v1006
    %1100 = vmatpush.msra.mxu0 %v1001
    %1101 = vmatpush.msra.mxu0 %v996
    %1102 = vmatmul.f32.gmra.mxu0 %v1046
    %v1103 = vpop.f32.mrf.mxu0
    %v1104 = vadd.f32 %v1028, %v1103
    %1105 = vmatmul.f32.gmra.mxu0 %v1049
    %v1106 = vpop.f32.mrf.mxu0
    %v1107 = vadd.f32 %v1033, %v1106
    %1108 = vmatmul.f32.gmra.mxu0 %v1052
    %v1109 = vpop.f32.mrf.mxu0
    %v1110 = vadd.f32 %v1038, %v1109
    %1111 = vmatmul.f32.gmra.mxu0 %v1055
    %v1112 = vpop.f32.mrf.mxu0
    %v1113 = vadd.f32 %v1043, %v1112
    %1114 = vdwg.mxu0
    %1115 = vmatpush.msra.mxu0 0.0
    %1116 = vmatpush.msra.mxu0 0.0
    %1117 = vmatpush.msra.mxu0 0.0
    %1118 = vmatpush.msra.mxu0 0.0
    %1119 = vmatpush.msra.mxu0 0.0
    %1120 = vmatpush.msra.mxu0 0.0
    %1121 = vmatpush.msra.mxu0 0.0
    %1122 = vmatpush.msra.mxu0 0.0
    %1123 = vmatpush.msra.mxu0 0.0
    %1124 = vmatpush.msra.mxu0 0.0
    %1125 = vmatpush.msra.mxu0 0.0
    %1126 = vmatpush.msra.mxu0 0.0
    %1127 = vmatpush.msra.mxu0 %v1012
    %1128 = vmatpush.msra.mxu0 %v1007
    %1129 = vmatpush.msra.mxu0 %v1002
    %1130 = vmatpush.msra.mxu0 %v997
    %1131 = vmatmul.f32.gmra.mxu0 %v1046
    %v1132 = vpop.f32.mrf.mxu0
    %v1133 = vadd.f32 %v1028, %v1132
    %1134 = vmatmul.f32.gmra.mxu0 %v1049
    %v1135 = vpop.f32.mrf.mxu0
    %v1136 = vadd.f32 %v1033, %v1135
    %1137 = vmatmul.f32.gmra.mxu0 %v1052
    %v1138 = vpop.f32.mrf.mxu0
    %v1139 = vadd.f32 %v1038, %v1138
    %1140 = vmatmul.f32.gmra.mxu0 %v1055
    %v1141 = vpop.f32.mrf.mxu0
    %v1142 = vadd.f32 %v1043, %v1141
    %1143 = vdwg.mxu0
    %1144 = vmatpush.msra.mxu0 0.0
    %1145 = vmatpush.msra.mxu0 0.0
    %1146 = vmatpush.msra.mxu0 0.0
    %1147 = vmatpush.msra.mxu0 0.0
    %1148 = vmatpush.msra.mxu0 0.0
    %1149 = vmatpush.msra.mxu0 0.0
    %1150 = vmatpush.msra.mxu0 0.0
    %1151 = vmatpush.msra.mxu0 0.0
    %1152 = vmatpush.msra.mxu0 0.0
    %1153 = vmatpush.msra.mxu0 0.0
    %1154 = vmatpush.msra.mxu0 0.0
    %1155 = vmatpush.msra.mxu0 0.0
    %1156 = vmatpush.msra.mxu0 %v1013
    %1157 = vmatpush.msra.mxu0 %v1008
    %1158 = vmatpush.msra.mxu0 %v1003
    %1159 = vmatpush.msra.mxu0 %v998
    %1160 = vmatmul.f32.gmra.mxu0 %v1046
    %v1161 = vpop.f32.mrf.mxu0
    %v1162 = vadd.f32 %v1028, %v1161
    %1163 = vmatmul.f32.gmra.mxu0 %v1049
    %v1164 = vpop.f32.mrf.mxu0
    %v1165 = vadd.f32 %v1033, %v1164
    %1166 = vmatmul.f32.gmra.mxu0 %v1052
    %v1167 = vpop.f32.mrf.mxu0
    %v1168 = vadd.f32 %v1038, %v1167
    %1169 = vmatmul.f32.gmra.mxu0 %v1055
    %v1170 = vpop.f32.mrf.mxu0
    %v1171 = vadd.f32 %v1043, %v1170
    %1172 = vdwg.mxu0
    %1173 = vmatpush.msra.mxu0 0.0
    %1174 = vmatpush.msra.mxu0 0.0
    %1175 = vmatpush.msra.mxu0 0.0
    %1176 = vmatpush.msra.mxu0 0.0
    %1177 = vmatpush.msra.mxu0 0.0
    %1178 = vmatpush.msra.mxu0 0.0
    %1179 = vmatpush.msra.mxu0 0.0
    %1180 = vmatpush.msra.mxu0 0.0
    %1181 = vmatpush.msra.mxu0 0.0
    %1182 = vmatpush.msra.mxu0 0.0
    %1183 = vmatpush.msra.mxu0 0.0
    %1184 = vmatpush.msra.mxu0 0.0
    %1185 = vmatpush.msra.mxu0 %v1014
    %1186 = vmatpush.msra.mxu0 %v1009
    %1187 = vmatpush.msra.mxu0 %v1004
    %1188 = vmatpush.msra.mxu0 %v999
    %1189 = vmatmul.f32.gmra.mxu0 %v1046
    %v1190 = vpop.f32.mrf.mxu0
    %v1191 = vadd.f32 %v1028, %v1190
    %1192 = vmatmul.f32.gmra.mxu0 %v1049
    %v1193 = vpop.f32.mrf.mxu0
    %v1194 = vadd.f32 %v1033, %v1193
    %1195 = vmatmul.f32.gmra.mxu0 %v1052
    %v1196 = vpop.f32.mrf.mxu0
    %v1197 = vadd.f32 %v1038, %v1196
    %1198 = vmatmul.f32.gmra.mxu0 %v1055
    %v1199 = vpop.f32.mrf.mxu0
    %v1200 = vadd.f32 %v1043, %v1199
    %1201 = vdwg.mxu0
    %v1202 = vmul.f32 %v1075, 0.01
    %v1203 = vmul.f32 %v1104, 0.01
    %v1204 = vmul.f32 %v1133, 0.01
    %v1205 = vmul.f32 %v1162, 0.01
    %v1206 = vmul.f32 %v1191, 0.01
    %v1207 = vmul.f32 %v1078, 0.01
    %v1208 = vmul.f32 %v1107, 0.01
    %v1209 = vmul.f32 %v1136, 0.01
    %v1210 = vmul.f32 %v1165, 0.01
    %v1211 = vmul.f32 %v1194, 0.01
    %v1212 = vmul.f32 %v1081, 0.01
    %v1213 = vmul.f32 %v1110, 0.01
    %v1214 = vmul.f32 %v1139, 0.01
    %v1215 = vmul.f32 %v1168, 0.01
    %v1216 = vmul.f32 %v1197, 0.01
    %v1217 = vmul.f32 %v1084, 0.01
    %v1218 = vmul.f32 %v1113, 0.01
    %v1219 = vmul.f32 %v1142, 0.01
    %v1220 = vmul.f32 %v1171, 0.01
    %v1221 = vmul.f32 %v1200, 0.01
    %v1222 = vmax.f32 %v1075, %v1202
    %v1223 = vmax.f32 %v1104, %v1203
    %v1224 = vmax.f32 %v1133, %v1204
    %v1225 = vmax.f32 %v1162, %v1205
    %v1226 = vmax.f32 %v1191, %v1206
    %v1227 = vmax.f32 %v1078, %v1207
    %v1228 = vmax.f32 %v1107, %v1208
    %v1229 = vmax.f32 %v1136, %v1209
    %v1230 = vmax.f32 %v1165, %v1210
    %v1231 = vmax.f32 %v1194, %v1211
    %v1232 = vmax.f32 %v1081, %v1212
    %v1233 = vmax.f32 %v1110, %v1213
    %v1234 = vmax.f32 %v1139, %v1214
    %v1235 = vmax.f32 %v1168, %v1215
    %v1236 = vmax.f32 %v1197, %v1216
    %v1237 = vmax.f32 %v1084, %v1217
    %v1238 = vmax.f32 %v1113, %v1218
    %v1239 = vmax.f32 %v1142, %v1219
    %v1240 = vmax.f32 %v1171, %v1220
    %v1241 = vmax.f32 %v1200, %v1221
    %s1242 = scalar_lea.vmem %s1, 128
    %v1243 = vld [vmem:[%s1242] sm:$0xff]
    %v1244 = vld [vmem:[%s1242 + $0x8] sm:$0xff]
    %v1245 = vld [vmem:[%s1242 + $0x10] sm:$0xff]
    %v1246 = vld [vmem:[%s1242 + $0x18] sm:$0xff]
    %s1247 = scalar_lea.vmem %s2, 128
    %v1248 = vld [vmem:[%s1247] sm:$0xff]
    %v1249 = vld [vmem:[%s1247 + $0x8] sm:$0xff]
    %v1250 = vld [vmem:[%s1247 + $0x10] sm:$0xff]
    %v1251 = vld [vmem:[%s1247 + $0x18] sm:$0xff]
    %1253 = vset.pattern.permute.xlu0 0
    %1254 = vperm.xlu0 %1253, %v1248
    %v1255 = vpop.permute.xlu0 %1254
    %1258 = vset.pattern.permute.xlu0 0
    %1259 = vperm.xlu0 %1258, %v1249
    %v1260 = vpop.permute.xlu0 %1259
    %1263 = vset.pattern.permute.xlu0 0
    %1264 = vperm.xlu0 %1263, %v1250
    %v1265 = vpop.permute.xlu0 %1264
    %1268 = vset.pattern.permute.xlu0 0
    %1269 = vperm.xlu0 %1268, %v1251
    %v1270 = vpop.permute.xlu0 %1269
    %v1273 = vsel %vm123, %v1243, 0
    %v1276 = vsel %vm123, %v1244, 0
    %v1279 = vsel %vm123, %v1245, 0
    %v1282 = vsel %vm123, %v1246, 0
    %1284 = vmatpush.msra.mxu0 0.0
    %1285 = vmatpush.msra.mxu0 0.0
    %1286 = vmatpush.msra.mxu0 0.0
    %1287 = vmatpush.msra.mxu0 0.0
    %1288 = vmatpush.msra.mxu0 0.0
    %1289 = vmatpush.msra.mxu0 0.0
    %1290 = vmatpush.msra.mxu0 0.0
    %1291 = vmatpush.msra.mxu0 0.0
    %1292 = vmatpush.msra.mxu0 0.0
    %1293 = vmatpush.msra.mxu0 0.0
    %1294 = vmatpush.msra.mxu0 0.0
    %1295 = vmatpush.msra.mxu0 0.0
    %1296 = vmatpush.msra.mxu0 %v1237
    %1297 = vmatpush.msra.mxu0 %v1232
    %1298 = vmatpush.msra.mxu0 %v1227
    %1299 = vmatpush.msra.mxu0 %v1222
    %1300 = vmatmul.f32.gmra.mxu0 %v1273
    %v1301 = vpop.f32.mrf.mxu0
    %v1302 = vadd.f32 %v1255, %v1301
    %1303 = vmatmul.f32.gmra.mxu0 %v1276
    %v1304 = vpop.f32.mrf.mxu0
    %v1305 = vadd.f32 %v1260, %v1304
    %1306 = vmatmul.f32.gmra.mxu0 %v1279
    %v1307 = vpop.f32.mrf.mxu0
    %v1308 = vadd.f32 %v1265, %v1307
    %1309 = vmatmul.f32.gmra.mxu0 %v1282
    %v1310 = vpop.f32.mrf.mxu0
    %v1311 = vadd.f32 %v1270, %v1310
    %1312 = vdwg.mxu0
    %1313 = vmatpush.msra.mxu0 0.0
    %1314 = vmatpush.msra.mxu0 0.0
    %1315 = vmatpush.msra.mxu0 0.0
    %1316 = vmatpush.msra.mxu0 0.0
    %1317 = vmatpush.msra.mxu0 0.0
    %1318 = vmatpush.msra.mxu0 0.0
    %1319 = vmatpush.msra.mxu0 0.0
    %1320 = vmatpush.msra.mxu0 0.0
    %1321 = vmatpush.msra.mxu0 0.0
    %1322 = vmatpush.msra.mxu0 0.0
    %1323 = vmatpush.msra.mxu0 0.0
    %1324 = vmatpush.msra.mxu0 0.0
    %1325 = vmatpush.msra.mxu0 %v1238
    %1326 = vmatpush.msra.mxu0 %v1233
    %1327 = vmatpush.msra.mxu0 %v1228
    %1328 = vmatpush.msra.mxu0 %v1223
    %1329 = vmatmul.f32.gmra.mxu0 %v1273
    %v1330 = vpop.f32.mrf.mxu0
    %v1331 = vadd.f32 %v1255, %v1330
    %1332 = vmatmul.f32.gmra.mxu0 %v1276
    %v1333 = vpop.f32.mrf.mxu0
    %v1334 = vadd.f32 %v1260, %v1333
    %1335 = vmatmul.f32.gmra.mxu0 %v1279
    %v1336 = vpop.f32.mrf.mxu0
    %v1337 = vadd.f32 %v1265, %v1336
    %1338 = vmatmul.f32.gmra.mxu0 %v1282
    %v1339 = vpop.f32.mrf.mxu0
    %v1340 = vadd.f32 %v1270, %v1339
    %1341 = vdwg.mxu0
    %1342 = vmatpush.msra.mxu0 0.0
    %1343 = vmatpush.msra.mxu0 0.0
    %1344 = vmatpush.msra.mxu0 0.0
    %1345 = vmatpush.msra.mxu0 0.0
    %1346 = vmatpush.msra.mxu0 0.0
    %1347 = vmatpush.msra.mxu0 0.0
    %1348 = vmatpush.msra.mxu0 0.0
    %1349 = vmatpush.msra.mxu0 0.0
    %1350 = vmatpush.msra.mxu0 0.0
    %1351 = vmatpush.msra.mxu0 0.0
    %1352 = vmatpush.msra.mxu0 0.0
    %1353 = vmatpush.msra.mxu0 0.0
    %1354 = vmatpush.msra.mxu0 %v1239
    %1355 = vmatpush.msra.mxu0 %v1234
    %1356 = vmatpush.msra.mxu0 %v1229
    %1357 = vmatpush.msra.mxu0 %v1224
    %1358 = vmatmul.f32.gmra.mxu0 %v1273
    %v1359 = vpop.f32.mrf.mxu0
    %v1360 = vadd.f32 %v1255, %v1359
    %1361 = vmatmul.f32.gmra.mxu0 %v1276
    %v1362 = vpop.f32.mrf.mxu0
    %v1363 = vadd.f32 %v1260, %v1362
    %1364 = vmatmul.f32.gmra.mxu0 %v1279
    %v1365 = vpop.f32.mrf.mxu0
    %v1366 = vadd.f32 %v1265, %v1365
    %1367 = vmatmul.f32.gmra.mxu0 %v1282
    %v1368 = vpop.f32.mrf.mxu0
    %v1369 = vadd.f32 %v1270, %v1368
    %1370 = vdwg.mxu0
    %1371 = vmatpush.msra.mxu0 0.0
    %1372 = vmatpush.msra.mxu0 0.0
    %1373 = vmatpush.msra.mxu0 0.0
    %1374 = vmatpush.msra.mxu0 0.0
    %1375 = vmatpush.msra.mxu0 0.0
    %1376 = vmatpush.msra.mxu0 0.0
    %1377 = vmatpush.msra.mxu0 0.0
    %1378 = vmatpush.msra.mxu0 0.0
    %1379 = vmatpush.msra.mxu0 0.0
    %1380 = vmatpush.msra.mxu0 0.0
    %1381 = vmatpush.msra.mxu0 0.0
    %1382 = vmatpush.msra.mxu0 0.0
    %1383 = vmatpush.msra.mxu0 %v1240
    %1384 = vmatpush.msra.mxu0 %v1235
    %1385 = vmatpush.msra.mxu0 %v1230
    %1386 = vmatpush.msra.mxu0 %v1225
    %1387 = vmatmul.f32.gmra.mxu0 %v1273
    %v1388 = vpop.f32.mrf.mxu0
    %v1389 = vadd.f32 %v1255, %v1388
    %1390 = vmatmul.f32.gmra.mxu0 %v1276
    %v1391 = vpop.f32.mrf.mxu0
    %v1392 = vadd.f32 %v1260, %v1391
    %1393 = vmatmul.f32.gmra.mxu0 %v1279
    %v1394 = vpop.f32.mrf.mxu0
    %v1395 = vadd.f32 %v1265, %v1394
    %1396 = vmatmul.f32.gmra.mxu0 %v1282
    %v1397 = vpop.f32.mrf.mxu0
    %v1398 = vadd.f32 %v1270, %v1397
    %1399 = vdwg.mxu0
    %1400 = vmatpush.msra.mxu0 0.0
    %1401 = vmatpush.msra.mxu0 0.0
    %1402 = vmatpush.msra.mxu0 0.0
    %1403 = vmatpush.msra.mxu0 0.0
    %1404 = vmatpush.msra.mxu0 0.0
    %1405 = vmatpush.msra.mxu0 0.0
    %1406 = vmatpush.msra.mxu0 0.0
    %1407 = vmatpush.msra.mxu0 0.0
    %1408 = vmatpush.msra.mxu0 0.0
    %1409 = vmatpush.msra.mxu0 0.0
    %1410 = vmatpush.msra.mxu0 0.0
    %1411 = vmatpush.msra.mxu0 0.0
    %1412 = vmatpush.msra.mxu0 %v1241
    %1413 = vmatpush.msra.mxu0 %v1236
    %1414 = vmatpush.msra.mxu0 %v1231
    %1415 = vmatpush.msra.mxu0 %v1226
    %1416 = vmatmul.f32.gmra.mxu0 %v1273
    %v1417 = vpop.f32.mrf.mxu0
    %v1418 = vadd.f32 %v1255, %v1417
    %1419 = vmatmul.f32.gmra.mxu0 %v1276
    %v1420 = vpop.f32.mrf.mxu0
    %v1421 = vadd.f32 %v1260, %v1420
    %1422 = vmatmul.f32.gmra.mxu0 %v1279
    %v1423 = vpop.f32.mrf.mxu0
    %v1424 = vadd.f32 %v1265, %v1423
    %1425 = vmatmul.f32.gmra.mxu0 %v1282
    %v1426 = vpop.f32.mrf.mxu0
    %v1427 = vadd.f32 %v1270, %v1426
    %1428 = vdwg.mxu0
    %v1429 = vmul.f32 %v1302, 0.01
    %v1430 = vmul.f32 %v1331, 0.01
    %v1431 = vmul.f32 %v1360, 0.01
    %v1432 = vmul.f32 %v1389, 0.01
    %v1433 = vmul.f32 %v1418, 0.01
    %v1434 = vmul.f32 %v1305, 0.01
    %v1435 = vmul.f32 %v1334, 0.01
    %v1436 = vmul.f32 %v1363, 0.01
    %v1437 = vmul.f32 %v1392, 0.01
    %v1438 = vmul.f32 %v1421, 0.01
    %v1439 = vmul.f32 %v1308, 0.01
    %v1440 = vmul.f32 %v1337, 0.01
    %v1441 = vmul.f32 %v1366, 0.01
    %v1442 = vmul.f32 %v1395, 0.01
    %v1443 = vmul.f32 %v1424, 0.01
    %v1444 = vmul.f32 %v1311, 0.01
    %v1445 = vmul.f32 %v1340, 0.01
    %v1446 = vmul.f32 %v1369, 0.01
    %v1447 = vmul.f32 %v1398, 0.01
    %v1448 = vmul.f32 %v1427, 0.01
    %v1449 = vmax.f32 %v1302, %v1429
    %v1450 = vmax.f32 %v1331, %v1430
    %v1451 = vmax.f32 %v1360, %v1431
    %v1452 = vmax.f32 %v1389, %v1432
    %v1453 = vmax.f32 %v1418, %v1433
    %v1454 = vmax.f32 %v1305, %v1434
    %v1455 = vmax.f32 %v1334, %v1435
    %v1456 = vmax.f32 %v1363, %v1436
    %v1457 = vmax.f32 %v1392, %v1437
    %v1458 = vmax.f32 %v1421, %v1438
    %v1459 = vmax.f32 %v1308, %v1439
    %v1460 = vmax.f32 %v1337, %v1440
    %v1461 = vmax.f32 %v1366, %v1441
    %v1462 = vmax.f32 %v1395, %v1442
    %v1463 = vmax.f32 %v1424, %v1443
    %v1464 = vmax.f32 %v1311, %v1444
    %v1465 = vmax.f32 %v1340, %v1445
    %v1466 = vmax.f32 %v1369, %v1446
    %v1467 = vmax.f32 %v1398, %v1447
    %v1468 = vmax.f32 %v1427, %v1448
    %s1469 = scalar_lea.vmem %s1, 160
    %v1470 = vld [vmem:[%s1469] sm:$0xff]
    %v1471 = vld [vmem:[%s1469 + $0x8] sm:$0xff]
    %v1472 = vld [vmem:[%s1469 + $0x10] sm:$0xff]
    %v1473 = vld [vmem:[%s1469 + $0x18] sm:$0xff]
    %s1474 = scalar_lea.vmem %s2, 160
    %v1475 = vld [vmem:[%s1474] sm:$0xff]
    %v1476 = vld [vmem:[%s1474 + $0x8] sm:$0xff]
    %v1477 = vld [vmem:[%s1474 + $0x10] sm:$0xff]
    %v1478 = vld [vmem:[%s1474 + $0x18] sm:$0xff]
    %1480 = vset.pattern.permute.xlu0 0
    %1481 = vperm.xlu0 %1480, %v1475
    %v1482 = vpop.permute.xlu0 %1481
    %1485 = vset.pattern.permute.xlu0 0
    %1486 = vperm.xlu0 %1485, %v1476
    %v1487 = vpop.permute.xlu0 %1486
    %1490 = vset.pattern.permute.xlu0 0
    %1491 = vperm.xlu0 %1490, %v1477
    %v1492 = vpop.permute.xlu0 %1491
    %1494 = vset.pattern.permute.xlu0 0
    %1495 = vperm.xlu0 %1494, %v1478
    %v1496 = vpop.permute.xlu0 %1495
    %v1498 = vsel %vm123, %v1470, 0
    %v1501 = vsel %vm123, %v1471, 0
    %v1504 = vsel %vm123, %v1472, 0
    %v1507 = vsel %vm123, %v1473, 0
    %1509 = vmatpush.msra.mxu0 0.0
    %1510 = vmatpush.msra.mxu0 0.0
    %1511 = vmatpush.msra.mxu0 0.0
    %1512 = vmatpush.msra.mxu0 0.0
    %1513 = vmatpush.msra.mxu0 0.0
    %1514 = vmatpush.msra.mxu0 0.0
    %1515 = vmatpush.msra.mxu0 0.0
    %1516 = vmatpush.msra.mxu0 0.0
    %1517 = vmatpush.msra.mxu0 0.0
    %1518 = vmatpush.msra.mxu0 0.0
    %1519 = vmatpush.msra.mxu0 0.0
    %1520 = vmatpush.msra.mxu0 0.0
    %1521 = vmatpush.msra.mxu0 %v1464
    %1522 = vmatpush.msra.mxu0 %v1459
    %1523 = vmatpush.msra.mxu0 %v1454
    %1524 = vmatpush.msra.mxu0 %v1449
    %1525 = vmatmul.f32.gmra.mxu0 %v1498
    %v1526 = vpop.f32.mrf.mxu0
    %v1527 = vadd.f32 %v1482, %v1526
    %1528 = vmatmul.f32.gmra.mxu0 %v1501
    %v1529 = vpop.f32.mrf.mxu0
    %v1530 = vadd.f32 %v1487, %v1529
    %1531 = vmatmul.f32.gmra.mxu0 %v1504
    %v1532 = vpop.f32.mrf.mxu0
    %1533 = vmatmul.f32.gmra.mxu0 %v1507
    %v1534 = vpop.f32.mrf.mxu0
    %1535 = vdwg.mxu0
    %1536 = vmatpush.msra.mxu0 0.0
    %1537 = vmatpush.msra.mxu0 0.0
    %1538 = vmatpush.msra.mxu0 0.0
    %1539 = vmatpush.msra.mxu0 0.0
    %1540 = vmatpush.msra.mxu0 0.0
    %1541 = vmatpush.msra.mxu0 0.0
    %1542 = vmatpush.msra.mxu0 0.0
    %1543 = vmatpush.msra.mxu0 0.0
    %1544 = vmatpush.msra.mxu0 0.0
    %1545 = vmatpush.msra.mxu0 0.0
    %1546 = vmatpush.msra.mxu0 0.0
    %1547 = vmatpush.msra.mxu0 0.0
    %1548 = vmatpush.msra.mxu0 %v1465
    %1549 = vmatpush.msra.mxu0 %v1460
    %1550 = vmatpush.msra.mxu0 %v1455
    %1551 = vmatpush.msra.mxu0 %v1450
    %1552 = vmatmul.f32.gmra.mxu0 %v1498
    %v1553 = vpop.f32.mrf.mxu0
    %v1554 = vadd.f32 %v1482, %v1553
    %1555 = vmatmul.f32.gmra.mxu0 %v1501
    %v1556 = vpop.f32.mrf.mxu0
    %v1557 = vadd.f32 %v1487, %v1556
    %1558 = vmatmul.f32.gmra.mxu0 %v1504
    %v1559 = vpop.f32.mrf.mxu0
    %1560 = vmatmul.f32.gmra.mxu0 %v1507
    %v1561 = vpop.f32.mrf.mxu0
    %1562 = vdwg.mxu0
    %1563 = vmatpush.msra.mxu0 0.0
    %1564 = vmatpush.msra.mxu0 0.0
    %1565 = vmatpush.msra.mxu0 0.0
    %1566 = vmatpush.msra.mxu0 0.0
    %1567 = vmatpush.msra.mxu0 0.0
    %1568 = vmatpush.msra.mxu0 0.0
    %1569 = vmatpush.msra.mxu0 0.0
    %1570 = vmatpush.msra.mxu0 0.0
    %1571 = vmatpush.msra.mxu0 0.0
    %1572 = vmatpush.msra.mxu0 0.0
    %1573 = vmatpush.msra.mxu0 0.0
    %1574 = vmatpush.msra.mxu0 0.0
    %1575 = vmatpush.msra.mxu0 %v1466
    %1576 = vmatpush.msra.mxu0 %v1461
    %1577 = vmatpush.msra.mxu0 %v1456
    %1578 = vmatpush.msra.mxu0 %v1451
    %1579 = vmatmul.f32.gmra.mxu0 %v1498
    %v1580 = vpop.f32.mrf.mxu0
    %v1581 = vadd.f32 %v1482, %v1580
    %1582 = vmatmul.f32.gmra.mxu0 %v1501
    %v1583 = vpop.f32.mrf.mxu0
    %v1584 = vadd.f32 %v1487, %v1583
    %1585 = vmatmul.f32.gmra.mxu0 %v1504
    %v1586 = vpop.f32.mrf.mxu0
    %1587 = vmatmul.f32.gmra.mxu0 %v1507
    %v1588 = vpop.f32.mrf.mxu0
    %1589 = vdwg.mxu0
    %1590 = vmatpush.msra.mxu0 0.0
    %1591 = vmatpush.msra.mxu0 0.0
    %1592 = vmatpush.msra.mxu0 0.0
    %1593 = vmatpush.msra.mxu0 0.0
    %1594 = vmatpush.msra.mxu0 0.0
    %1595 = vmatpush.msra.mxu0 0.0
    %1596 = vmatpush.msra.mxu0 0.0
    %1597 = vmatpush.msra.mxu0 0.0
    %1598 = vmatpush.msra.mxu0 0.0
    %1599 = vmatpush.msra.mxu0 0.0
    %1600 = vmatpush.msra.mxu0 0.0
    %1601 = vmatpush.msra.mxu0 0.0
    %1602 = vmatpush.msra.mxu0 %v1467
    %1603 = vmatpush.msra.mxu0 %v1462
    %1604 = vmatpush.msra.mxu0 %v1457
    %1605 = vmatpush.msra.mxu0 %v1452
    %1606 = vmatmul.f32.gmra.mxu0 %v1498
    %v1607 = vpop.f32.mrf.mxu0
    %v1608 = vadd.f32 %v1482, %v1607
    %1609 = vmatmul.f32.gmra.mxu0 %v1501
    %v1610 = vpop.f32.mrf.mxu0
    %v1611 = vadd.f32 %v1487, %v1610
    %1612 = vmatmul.f32.gmra.mxu0 %v1504
    %v1613 = vpop.f32.mrf.mxu0
    %1614 = vmatmul.f32.gmra.mxu0 %v1507
    %v1615 = vpop.f32.mrf.mxu0
    %1616 = vdwg.mxu0
    %1617 = vmatpush.msra.mxu0 0.0
    %1618 = vmatpush.msra.mxu0 0.0
    %1619 = vmatpush.msra.mxu0 0.0
    %1620 = vmatpush.msra.mxu0 0.0
    %1621 = vmatpush.msra.mxu0 0.0
    %1622 = vmatpush.msra.mxu0 0.0
    %1623 = vmatpush.msra.mxu0 0.0
    %1624 = vmatpush.msra.mxu0 0.0
    %1625 = vmatpush.msra.mxu0 0.0
    %1626 = vmatpush.msra.mxu0 0.0
    %1627 = vmatpush.msra.mxu0 0.0
    %1628 = vmatpush.msra.mxu0 0.0
    %1629 = vmatpush.msra.mxu0 %v1468
    %1630 = vmatpush.msra.mxu0 %v1463
    %1631 = vmatpush.msra.mxu0 %v1458
    %1632 = vmatpush.msra.mxu0 %v1453
    %1633 = vmatmul.f32.gmra.mxu0 %v1498
    %v1634 = vpop.f32.mrf.mxu0
    %v1635 = vadd.f32 %v1482, %v1634
    %1636 = vmatmul.f32.gmra.mxu0 %v1501
    %v1637 = vpop.f32.mrf.mxu0
    %v1638 = vadd.f32 %v1487, %v1637
    %1639 = vmatmul.f32.gmra.mxu0 %v1504
    %v1640 = vpop.f32.mrf.mxu0
    %1641 = vmatmul.f32.gmra.mxu0 %v1507
    %v1642 = vpop.f32.mrf.mxu0
    %1643 = vdwg.mxu0
    %1644 = vst [vmem:[#allocation2] sm:$0xff] %v1527
    %1645 = vst [vmem:[#allocation2 + $0x8] sm:$0xff] %v1554
    %1646 = vst [vmem:[#allocation2 + $0x10] sm:$0xff] %v1581
    %1647 = vst [vmem:[#allocation2 + $0x18] sm:$0xff] %v1608
    %1648 = vst [vmem:[#allocation2 + $0x20] sm:$0xff] %v1635
    %1649 = vst [vmem:[#allocation2 + $0x28] sm:$0xff] %v1530
    %1650 = vst [vmem:[#allocation2 + $0x30] sm:$0xff] %v1557
    %1651 = vst [vmem:[#allocation2 + $0x38] sm:$0xff] %v1584
    %1652 = vst [vmem:[#allocation2 + $0x40] sm:$0xff] %v1611
    %1653 = vst [vmem:[#allocation2 + $0x48] sm:$0xff] %v1638
    // Predicated region
    $region14: #{tpu_custom_call.1} parent=1 // pred_check
      _
    $region15: #{tpu_custom_call.1} parent=1 // pred_check_branch
      %1655 = sbr.rel (0) target = $region17
    $region16: #{tpu_custom_call.1} parent=1 // pred_region
      %1657 = vsyncadd [#allocation3], 0
      %s1658 = sshll.u32 [#allocation2], 4
      %s1659 = int_to_ptr.vmem [resolvable:$true] %s1658
      %s1660 = sshll.u32 %s3, 4
      %s1661 = int_to_ptr.hbm [resolvable:$true] %s1660
      %1666 = dma.vmem_to_hbm [thread:$0]  %s1659, 1280, %s1661, [#allocation3], 640, 640, 40
    $region17: #{tpu_custom_call.1} parent=1 // pred_fallthru
      _
    // Predicated region
    $region18: #{tpu_custom_call.1} parent=1 // pred_check
      _
    $region19: #{tpu_custom_call.1} parent=1 // pred_check_branch
      %1668 = sbr.rel (0) target = $region21
    $region20: #{tpu_custom_call.1} parent=1 // pred_region
      %1670 = dma.done [#allocation3], 1280
    $region21: #{tpu_custom_call.1} parent=1 // pred_fallthru
      _
    %1671 = vsyncpa [#allocation3], 1

</llo_original>
